<compile_context>
chip_gen: v5e
topology: v5e:2x2
jax: 0.10.0
libtpu: 0.0.40
codegen_flags: <defaults>
</compile_context>

<pallas_src>
import math

import jax
import jax.numpy as jnp
from jax.experimental import pallas as pl
from jax.experimental.pallas import tpu as pltpu

PAD_TOKEN_ID = 0
NEG_INF = -1e30


def _gelu(x):
    return jax.nn.gelu(x, approximate=True)


# ---------------------------------------------------------------------------
# Fused Pallas kernel: one (batch block, vocab tile) per grid step.
#   j == 0 : memory-model CLS + mlp + prefix splice + causal attention; the
#            post-attention hidden state (rows 1..S, bf16) is stashed in h_ref
#            (VMEM scratch, persists across the vocab axis).
#   each j : one LM-head vocab tile  out = h @ W_lm[:, j*TV:(j+1)*TV].
# ---------------------------------------------------------------------------
def cross_model_kernel(mem_cls_ref, tgt_emb_ref, key_bias_ref,
                       w_mem_ref, b_mem_ref,
                       w1_ref, b1_ref, w2_ref, b2_ref,
                       wqkv_ref, w_lm_ref,
                       out_ref, h_ref):
    f32 = jnp.float32
    bf16 = jnp.bfloat16
    bt, s1p, dt = tgt_emb_ref.shape
    s = out_ref.shape[1]           # real (un-prefixed) sequence length
    tv = out_ref.shape[2]          # vocab tile width

    @pl.when(pl.program_id(1) == 0)
    def _compute_hidden():
        # ---- memory model (stand-in encoder layer): only the CLS row ----
        cls = mem_cls_ref[:, 0, :]                                    # (Bt, Dm)
        mem_h = _gelu(jnp.dot(cls.astype(bf16), w_mem_ref[...],
                              preferred_element_type=f32) + b_mem_ref[...])

        # ---- mlp: cls_transformed = mlp(cls_embedding) ----
        h1 = _gelu(jnp.dot(mem_h.astype(bf16), w1_ref[...],
                           preferred_element_type=f32) + b1_ref[...])
        cls_t = jnp.dot(h1.astype(bf16), w2_ref[...],
                        preferred_element_type=f32) + b2_ref[...]     # (Bt, Dt)

        # ---- hook_wte_forward: replace row 0 with cls_t (select, no concat) --
        tgt = tgt_emb_ref[...]                                        # (Bt,S1p,Dt)
        is_row0 = jax.lax.broadcasted_iota(jnp.int32, (1, s1p, 1), 1) == 0
        emb = jnp.where(is_row0, cls_t[:, None, :], tgt)

        # ---- target model: fused QKV (1/sqrt(dt) pre-folded into Wq) ----
        qkv = jnp.dot(emb.reshape(bt * s1p, dt).astype(bf16), wqkv_ref[...],
                      preferred_element_type=f32).reshape(bt, s1p, 3 * dt)
        # NOTE: at realistic dims keep dt % 128 == 0 so these lane slices are
        # tile-aligned (free); at the toy dt here the relayout is tiny.
        q = qkv[:, :, 0:dt]
        k = qkv[:, :, dt:2 * dt]
        v = qkv[:, :, 2 * dt:3 * dt]

        # TODO(synk): for realistic S this (Bt,S1p,S1p) scores slab must be
        # replaced by a KV-tiled online-softmax loop (flash-style).
        scores = jnp.einsum("bqd,bkd->bqk", q.astype(bf16), k.astype(bf16),
                            preferred_element_type=f32)               # (Bt,S1p,S1p)
        row = jax.lax.broadcasted_iota(jnp.int32, (s1p, s1p), 0)
        col = jax.lax.broadcasted_iota(jnp.int32, (s1p, s1p), 1)
        causal_bias = jnp.where(col <= row, 0.0, NEG_INF)[None, :, :]
        scores = scores + causal_bias + key_bias_ref[...]             # (Bt,1,S1p) bcast
        scores = scores - jnp.max(scores, axis=-1, keepdims=True)
        e = jnp.exp(scores)
        p = e * pl.reciprocal(jnp.sum(e, axis=-1, keepdims=True), approx=True)
        attn = jnp.einsum("bqk,bkd->bqd", p.astype(bf16), v.astype(bf16),
                          preferred_element_type=f32)
        h = emb + attn                                                # (Bt,S1p,Dt)

        # output.logits = target_logits[:, 1:]  ->  only rows 1..S feed the LM
        # head; the prefix row and the alignment padding are dropped here so
        # the largest tensor is never computed / written for discarded rows.
        h_ref[...] = h[:, 1:s + 1, :].reshape(bt * s, dt).astype(bf16)

    # ---- LM head: one lane-dense vocab tile per grid step (every j) ----
    logits = jnp.dot(h_ref[...], w_lm_ref[...], preferred_element_type=f32)
    out_ref[...] = logits.reshape(bt, s, tv).astype(out_ref.dtype)


# ---------------------------------------------------------------------------
# Glue: add_memory_prefix + embedding gathers + pallas_call wrapper.
# ---------------------------------------------------------------------------
def add_memory_prefix(input_ids, attention_mask, pad_token_id=PAD_TOKEN_ID):
    b = input_ids.shape[0]
    ids = jnp.concatenate(
        [jnp.full((b, 1), pad_token_id, input_ids.dtype), input_ids], axis=1)
    if attention_mask is not None:
        attention_mask = jnp.concatenate(
            [jnp.full((b, 1), 1, attention_mask.dtype), attention_mask], axis=1)
    return ids, attention_mask


def _pick_block_b(b, s1p, block_b):
    if block_b is None:
        # flattened MXU M dim (block_b * S1p) >= 256 (v6e/v7x); at realistic S
        # this resolves to 1.  TODO(synk): also cap by per-generation VMEM.
        block_b = min(b, max(1, pl.cdiv(256, s1p)))
    block_b = max(1, min(block_b, b))
    while b % block_b != 0:
        block_b -= 1
    return block_b


def _pick_block_v(vocab, block_v):
    if block_v is not None and vocab % block_v == 0:
        return block_v
    if vocab % 128 == 0:
        cand = min(vocab, 2048)
        while vocab % cand != 0:
            cand -= 128
        return cand
    return vocab


def cross_model_forward(params, tgt_input_ids, tgt_attention_mask,
                        mem_input_ids, block_b=None, block_v=None,
                        out_dtype=jnp.float32):
    # TODO(synk): decode_and_reencode requires real tokenizers; memory-model
    # token ids are supplied directly instead of decoding+re-encoding text.
    b, s = tgt_input_ids.shape
    dm = params["E_mem"].shape[1]
    dh = params["W1"].shape[1]
    dt = params["E_tgt"].shape[1]
    vocab = params["W_lm"].shape[1]

    pref_ids, pref_mask = add_memory_prefix(tgt_input_ids, tgt_attention_mask)
    # pad the prefixed sequence to a multiple of 8 sublanes; pad keys are
    # masked via key_bias (and are behind every kept query causally anyway).
    s1p = ((s + 1 + 7) // 8) * 8
    pad = s1p - (s + 1)
    if pad:
        pref_ids = jnp.pad(pref_ids, ((0, 0), (0, pad)),
                           constant_values=PAD_TOKEN_ID)
        pref_mask = jnp.pad(pref_mask, ((0, 0), (0, pad)), constant_values=0)

    block_b = _pick_block_b(b, s1p, block_b)
    block_v = _pick_block_v(vocab, block_v)

    # Glue (embedding gathers).  Only the CLS row of the memory-model input is
    # needed by the stand-in row-wise encoder, so only that row is gathered and
    # DMA'd into the kernel (Sm x less memory-model traffic and FLOPs).
    mem_cls_emb = params["E_mem"][mem_input_ids[:, :1]]      # (B, 1, Dm)
    tgt_emb = params["E_tgt"][pref_ids]                      # (B, S1p, Dt) wte
    key_bias = jnp.where(pref_mask > 0, 0.0, NEG_INF).astype(
        jnp.float32).reshape(b, 1, s1p)

    bf16 = jnp.bfloat16
    # MXU operands in bf16 (weights cast once here); fold 1/sqrt(dt) into Wq.
    wqkv = jnp.concatenate(
        [params["Wq"] * (1.0 / math.sqrt(dt)), params["Wk"], params["Wv"]],
        axis=1).astype(bf16)
    w_mem = params["W_mem"].astype(bf16)
    w1 = params["W1"].astype(bf16)
    w2 = params["W2"].astype(bf16)
    w_lm = params["W_lm"].astype(bf16)

    bmap = lambda i, j: (i, 0, 0)      # batch-block inputs (invariant in j)
    wmap = lambda i, j: (0, 0)         # grid-invariant weights

    def build(single_buffer_weights):
        wkw = ({"pipeline_mode": pl.Buffered(1)}
               if single_buffer_weights else {})
        in_specs = [
            pl.BlockSpec((block_b, 1, dm), bmap),           # memory CLS embedding
            pl.BlockSpec((block_b, s1p, dt), bmap),         # target wte (prefixed)
            pl.BlockSpec((block_b, 1, s1p), bmap),          # additive key-mask bias
            pl.BlockSpec((dm, dm), wmap, **wkw),            # W_mem
            pl.BlockSpec((1, dm), wmap, **wkw),             # b_mem
            pl.BlockSpec((dm, dh), wmap, **wkw),            # mlp W1
            pl.BlockSpec((1, dh), wmap, **wkw),             # mlp b1
            pl.BlockSpec((dh, dt), wmap, **wkw),            # mlp W2
            pl.BlockSpec((1, dt), wmap, **wkw),             # mlp b2
            pl.BlockSpec((dt, 3 * dt), wmap, **wkw),        # fused Wqkv (scaled)
            pl.BlockSpec((dt, block_v), lambda i, j: (0, j)),  # LM-head vocab tile
        ]
        return pl.pallas_call(
            cross_model_kernel,
            out_shape=jax.ShapeDtypeStruct((b, s, vocab), out_dtype),
            grid_spec=pltpu.PrefetchScalarGridSpec(
                num_scalar_prefetch=0,
                grid=(b // block_b, vocab // block_v),
                in_specs=in_specs,
                out_specs=pl.BlockSpec((block_b, s, block_v),
                                       lambda i, j: (i, 0, j)),
                scratch_shapes=[pltpu.VMEM((block_b * s, dt), jnp.bfloat16)],
            ),
            # vocab axis must be "arbitrary": the h scratch written at j == 0
            # is reused by every later vocab tile of the same batch block.
            compiler_params=pltpu.CompilerParams(
                dimension_semantics=("parallel", "arbitrary")),
        )

    args = (mem_cls_emb, tgt_emb, key_bias,
            w_mem, params["b_mem"], w1, params["b1"], w2, params["b2"],
            wqkv, w_lm)
    try:
        return build(True)(*args)
    except Exception:
        # pipeline_mode=pl.Buffered(1) (single-buffered weights) is a VMEM
        # optimization only; fall back to default double-buffering if this
        # jax/libtpu build rejects it.
        return build(False)(*args)


# ---------------------------------------------------------------------------
# Pure-JAX reference (same math, f32) for a correctness check.
# ---------------------------------------------------------------------------
def cross_model_forward_ref(params, tgt_input_ids, tgt_attention_mask,
                            mem_input_ids):
    pref_ids, pref_mask = add_memory_prefix(tgt_input_ids, tgt_attention_mask)
    mem_emb = params["E_mem"][mem_input_ids]
    tgt_emb = params["E_tgt"][pref_ids]

    mem_h = _gelu(jnp.einsum("bsd,de->bse", mem_emb, params["W_mem"])
                  + params["b_mem"])
    cls = mem_h[:, 0, :]
    h1 = _gelu(cls @ params["W1"] + params["b1"])
    cls_t = h1 @ params["W2"] + params["b2"]

    emb = jnp.concatenate([cls_t[:, None, :], tgt_emb[:, 1:, :]], axis=1)
    dt = emb.shape[-1]
    s1 = emb.shape[1]
    q = jnp.einsum("bsd,de->bse", emb, params["Wq"])
    k = jnp.einsum("bsd,de->bse", emb, params["Wk"])
    v = jnp.einsum("bsd,de->bse", emb, params["Wv"])
    scores = jnp.einsum("bqd,bkd->bqk", q, k) / math.sqrt(dt)
    causal = jnp.tril(jnp.ones((s1, s1), bool))[None]
    key_mask = (pref_mask > 0)[:, None, :]
    scores = jnp.where(jnp.logical_and(causal, key_mask), scores, NEG_INF)
    p = jax.nn.softmax(scores, axis=-1)
    h = emb + jnp.einsum("bqk,bkd->bqd", p, v)
    logits = jnp.einsum("bsd,dv->bsv", h, params["W_lm"])
    return logits[:, 1:, :]


def init_params(key, mem_vocab=100, tgt_vocab=256, dm=32, dh=64, dt=32):
    ks = jax.random.split(key, 9)
    s = 0.02
    p = {
        "E_mem": jax.random.normal(ks[0], (mem_vocab, dm)) * s,
        "W_mem": jax.random.normal(ks[1], (dm, dm)) * s,
        "b_mem": jnp.zeros((1, dm)),
        "W1": jax.random.normal(ks[2], (dm, dh)) * s,
        "b1": jnp.zeros((1, dh)),
        "W2": jax.random.normal(ks[3], (dh, dt)) * s,
        "b2": jnp.zeros((1, dt)),
        "E_tgt": jax.random.normal(ks[4], (tgt_vocab, dt)) * s,
        "Wq": jax.random.normal(ks[5], (dt, dt)) * s,
        "Wk": jax.random.normal(ks[6], (dt, dt)) * s,
        "Wv": jax.random.normal(ks[7], (dt, dt)) * s,
        "W_lm": jax.random.normal(ks[8], (dt, tgt_vocab)) * s,
    }
    return {k: v.astype(jnp.float32) for k, v in p.items()}


if __name__ == "__main__":
    key = jax.random.PRNGKey(0)
    kp, k1, k2 = jax.random.split(key, 3)

    B, S, SM = 4, 8, 8
    TGT_VOCAB, MEM_VOCAB = 256, 100

    params = init_params(kp, mem_vocab=MEM_VOCAB, tgt_vocab=TGT_VOCAB)

    tgt_input_ids = jax.random.randint(k1, (B, S), 1, TGT_VOCAB, dtype=jnp.int32)
    mem_input_ids = jax.random.randint(k2, (B, SM), 1, MEM_VOCAB, dtype=jnp.int32)
    # pad out some trailing tokens to exercise the attention mask
    tgt_attention_mask = (jnp.ones((B, S), jnp.int32)
                          .at[1, -1].set(0)
                          .at[3, -2:].set(0))

    # block_b=2, block_v=128 -> 2x2 grid (exercises batch-block AND vocab tiling)
    logits = cross_model_forward(params, tgt_input_ids, tgt_attention_mask,
                                 mem_input_ids, block_b=2, block_v=128)
    logits = jax.block_until_ready(logits)

    ref = cross_model_forward_ref(params, tgt_input_ids, tgt_attention_mask,
                                  mem_input_ids)
    assert logits.shape == (B, S, TGT_VOCAB)
    max_err = float(jnp.max(jnp.abs(logits - ref)))
    # tolerance covers bf16 MXU operands (accumulation stays f32)
    assert jnp.allclose(logits, ref, atol=5e-4, rtol=1e-3), max_err

    print("KERNEL_OK")
</pallas_src>

<mosaic_0001>
module attributes {stable_mosaic.version = 11 : i64} {
  func.func @cross_model_kernel(%arg0: i32, %arg1: i32, %arg2: memref<2x1x32xf32, #tpu.memory_space<vmem>>, %arg3: memref<2x16x32xf32, #tpu.memory_space<vmem>>, %arg4: memref<2x1x16xf32, #tpu.memory_space<vmem>>, %arg5: memref<32x32xbf16, #tpu.memory_space<vmem>>, %arg6: memref<1x32xf32, #tpu.memory_space<vmem>>, %arg7: memref<32x64xbf16, #tpu.memory_space<vmem>>, %arg8: memref<1x64xf32, #tpu.memory_space<vmem>>, %arg9: memref<64x32xbf16, #tpu.memory_space<vmem>>, %arg10: memref<1x32xf32, #tpu.memory_space<vmem>>, %arg11: memref<32x96xbf16, #tpu.memory_space<vmem>>, %arg12: memref<32x128xbf16, #tpu.memory_space<vmem>>, %arg13: memref<2x8x128xf32, #tpu.memory_space<vmem>>, %arg14: memref<16x32xbf16, #tpu.memory_space<vmem>>) attributes {dimension_semantics = [#tpu.dimension_semantics<parallel>, #tpu.dimension_semantics<arbitrary>], iteration_bounds = array<i64: 2, 2>, scalar_prefetch = 0 : i64, scratch_operands = 1 : i64, tpu.core_type = #tpu.core_type<tc>, window_params = [{transform_indices = @transform_0, window_bounds = array<i64: 2, 1, 32>}, {transform_indices = @transform_1, window_bounds = array<i64: 2, 16, 32>}, {transform_indices = @transform_2, window_bounds = array<i64: 2, 1, 16>}, {pipeline_mode = #tpu.pipeline_mode<synchronous>, transform_indices = @transform_3, window_bounds = array<i64: 32, 32>}, {pipeline_mode = #tpu.pipeline_mode<synchronous>, transform_indices = @transform_4, window_bounds = array<i64: 1, 32>}, {pipeline_mode = #tpu.pipeline_mode<synchronous>, transform_indices = @transform_5, window_bounds = array<i64: 32, 64>}, {pipeline_mode = #tpu.pipeline_mode<synchronous>, transform_indices = @transform_6, window_bounds = array<i64: 1, 64>}, {pipeline_mode = #tpu.pipeline_mode<synchronous>, transform_indices = @transform_7, window_bounds = array<i64: 64, 32>}, {pipeline_mode = #tpu.pipeline_mode<synchronous>, transform_indices = @transform_8, window_bounds = array<i64: 1, 32>}, {pipeline_mode = #tpu.pipeline_mode<synchronous>, transform_indices = @transform_9, window_bounds = array<i64: 32, 96>}, {transform_indices = @transform_10, window_bounds = array<i64: 32, 128>}, {transform_indices = @transform_11, window_bounds = array<i64: 2, 8, 128>}]} {
    %c0_i32 = arith.constant 0 : i32
    %0 = arith.cmpi eq, %arg1, %c0_i32 : i32
    %1 = arith.extui %0 : i1 to i32
    %c0_i32_0 = arith.constant 0 : i32
    %2 = arith.cmpi ne, %1, %c0_i32_0 : i32
    scf.if %2 {
      %c0_7 = arith.constant 0 : index
      %c0_8 = arith.constant 0 : index
      %c0_9 = arith.constant 0 : index
      %8 = vector.load %arg2[%c0_7, %c0_8, %c0_9] : memref<2x1x32xf32, #tpu.memory_space<vmem>>, vector<2x1x32xf32>
      %9 = vector.shape_cast %8 : vector<2x1x32xf32> to vector<2x32xf32>
      %10 = arith.truncf %9 : vector<2x32xf32> to vector<2x32xbf16>
      %c0_10 = arith.constant 0 : index
      %c0_11 = arith.constant 0 : index
      %11 = vector.load %arg5[%c0_10, %c0_11] : memref<32x32xbf16, #tpu.memory_space<vmem>>, vector<32x32xbf16>
      %cst_12 = arith.constant dense<0.000000e+00> : vector<2x32xf32>
      %12 = tpu.matmul %10, %11, %cst_12 {dimension_numbers = #tpu.dot_dimension_numbers<[1], [0], [0], [1], [0, 0, 1, 1], [], []>} : vector<2x32xbf16>, vector<32x32xbf16>, vector<2x32xf32> -> vector<2x32xf32>
      %c0_13 = arith.constant 0 : index
      %c0_14 = arith.constant 0 : index
      %13 = vector.load %arg6[%c0_13, %c0_14] : memref<1x32xf32, #tpu.memory_space<vmem>>, vector<1x32xf32>
      %14 = vector.broadcast %13 : vector<1x32xf32> to vector<2x32xf32>
      %15 = arith.addf %12, %14 : vector<2x32xf32>
      %16 = arith.mulf %15, %15 : vector<2x32xf32>
      %17 = arith.mulf %15, %16 : vector<2x32xf32>
      %cst_15 = arith.constant 4.471500e-02 : f32
      %18 = vector.broadcast %cst_15 : f32 to vector<2x32xf32>
      %19 = arith.mulf %18, %17 : vector<2x32xf32>
      %20 = arith.addf %15, %19 : vector<2x32xf32>
      %cst_16 = arith.constant 0.797884583 : f32
      %21 = vector.broadcast %cst_16 : f32 to vector<2x32xf32>
      %22 = arith.mulf %21, %20 : vector<2x32xf32>
      %23 = math.tanh %22 : vector<2x32xf32>
      %cst_17 = arith.constant 1.000000e+00 : f32
      %24 = vector.broadcast %cst_17 : f32 to vector<2x32xf32>
      %25 = arith.addf %24, %23 : vector<2x32xf32>
      %cst_18 = arith.constant 5.000000e-01 : f32
      %26 = vector.broadcast %cst_18 : f32 to vector<2x32xf32>
      %27 = arith.mulf %26, %25 : vector<2x32xf32>
      %28 = arith.mulf %15, %27 : vector<2x32xf32>
      %29 = arith.truncf %28 : vector<2x32xf32> to vector<2x32xbf16>
      %c0_19 = arith.constant 0 : index
      %c0_20 = arith.constant 0 : index
      %30 = vector.load %arg7[%c0_19, %c0_20] : memref<32x64xbf16, #tpu.memory_space<vmem>>, vector<32x64xbf16>
      %cst_21 = arith.constant dense<0.000000e+00> : vector<2x64xf32>
      %31 = tpu.matmul %29, %30, %cst_21 {dimension_numbers = #tpu.dot_dimension_numbers<[1], [0], [0], [1], [0, 0, 1, 1], [], []>} : vector<2x32xbf16>, vector<32x64xbf16>, vector<2x64xf32> -> vector<2x64xf32>
      %c0_22 = arith.constant 0 : index
      %c0_23 = arith.constant 0 : index
      %32 = vector.load %arg8[%c0_22, %c0_23] : memref<1x64xf32, #tpu.memory_space<vmem>>, vector<1x64xf32>
      %33 = vector.broadcast %32 : vector<1x64xf32> to vector<2x64xf32>
      %34 = arith.addf %31, %33 : vector<2x64xf32>
      %35 = arith.mulf %34, %34 : vector<2x64xf32>
      %36 = arith.mulf %34, %35 : vector<2x64xf32>
      %cst_24 = arith.constant 4.471500e-02 : f32
      %37 = vector.broadcast %cst_24 : f32 to vector<2x64xf32>
      %38 = arith.mulf %37, %36 : vector<2x64xf32>
      %39 = arith.addf %34, %38 : vector<2x64xf32>
      %cst_25 = arith.constant 0.797884583 : f32
      %40 = vector.broadcast %cst_25 : f32 to vector<2x64xf32>
      %41 = arith.mulf %40, %39 : vector<2x64xf32>
      %42 = math.tanh %41 : vector<2x64xf32>
      %cst_26 = arith.constant 1.000000e+00 : f32
      %43 = vector.broadcast %cst_26 : f32 to vector<2x64xf32>
      %44 = arith.addf %43, %42 : vector<2x64xf32>
      %cst_27 = arith.constant 5.000000e-01 : f32
      %45 = vector.broadcast %cst_27 : f32 to vector<2x64xf32>
      %46 = arith.mulf %45, %44 : vector<2x64xf32>
      %47 = arith.mulf %34, %46 : vector<2x64xf32>
      %48 = arith.truncf %47 : vector<2x64xf32> to vector<2x64xbf16>
      %c0_28 = arith.constant 0 : index
      %c0_29 = arith.constant 0 : index
      %49 = vector.load %arg9[%c0_28, %c0_29] : memref<64x32xbf16, #tpu.memory_space<vmem>>, vector<64x32xbf16>
      %cst_30 = arith.constant dense<0.000000e+00> : vector<2x32xf32>
      %50 = tpu.matmul %48, %49, %cst_30 {dimension_numbers = #tpu.dot_dimension_numbers<[1], [0], [0], [1], [0, 0, 1, 1], [], []>} : vector<2x64xbf16>, vector<64x32xbf16>, vector<2x32xf32> -> vector<2x32xf32>
      %c0_31 = arith.constant 0 : index
      %c0_32 = arith.constant 0 : index
      %51 = vector.load %arg10[%c0_31, %c0_32] : memref<1x32xf32, #tpu.memory_space<vmem>>, vector<1x32xf32>
      %52 = vector.broadcast %51 : vector<1x32xf32> to vector<2x32xf32>
      %53 = arith.addf %50, %52 : vector<2x32xf32>
      %c0_33 = arith.constant 0 : index
      %c0_34 = arith.constant 0 : index
      %c0_35 = arith.constant 0 : index
      %54 = vector.load %arg3[%c0_33, %c0_34, %c0_35] : memref<2x16x32xf32, #tpu.memory_space<vmem>>, vector<2x16x32xf32>
      %55 = tpu.iota {dimensions = array<i32: 1>} : vector<1x16x1xi32>
      %c0_i32_36 = arith.constant 0 : i32
      %56 = vector.broadcast %c0_i32_36 : i32 to vector<1x16x1xi32>
      %57 = arith.cmpi eq, %55, %56 : vector<1x16x1xi32>
      %58 = vector.shape_cast %53 : vector<2x32xf32> to vector<2x1x32xf32>
      %59 = vector.shape_cast %57 : vector<1x16x1xi1> to vector<1x16x1xi1>
      %60 = vector.broadcast %59 : vector<1x16x1xi1> to vector<2x16x32xi1>
      %61 = vector.shape_cast %58 : vector<2x1x32xf32> to vector<2x1x32xf32>
      %62 = vector.broadcast %61 : vector<2x1x32xf32> to vector<2x16x32xf32>
      %63 = arith.select %60, %62, %54 : vector<2x16x32xi1>, vector<2x16x32xf32>
      %64 = vector.shape_cast %63 : vector<2x16x32xf32> to vector<32x32xf32>
      %65 = arith.truncf %64 : vector<32x32xf32> to vector<32x32xbf16>
      %c0_37 = arith.constant 0 : index
      %c0_38 = arith.constant 0 : index
      %66 = vector.load %arg11[%c0_37, %c0_38] : memref<32x96xbf16, #tpu.memory_space<vmem>>, vector<32x96xbf16>
      %cst_39 = arith.constant dense<0.000000e+00> : vector<32x96xf32>
      %67 = tpu.matmul %65, %66, %cst_39 {dimension_numbers = #tpu.dot_dimension_numbers<[1], [0], [0], [1], [0, 0, 1, 1], [], []>} : vector<32x32xbf16>, vector<32x96xbf16>, vector<32x96xf32> -> vector<32x96xf32>
      %68 = vector.shape_cast %67 : vector<32x96xf32> to vector<2x16x96xf32>
      %69 = vector.extract_strided_slice %68 {offsets = [0, 0, 0], sizes = [2, 16, 32], strides = [1, 1, 1]} : vector<2x16x96xf32> to vector<2x16x32xf32>
      %70 = vector.extract_strided_slice %68 {offsets = [0, 0, 32], sizes = [2, 16, 32], strides = [1, 1, 1]} : vector<2x16x96xf32> to vector<2x16x32xf32>
      %71 = vector.extract_strided_slice %68 {offsets = [0, 0, 64], sizes = [2, 16, 32], strides = [1, 1, 1]} : vector<2x16x96xf32> to vector<2x16x32xf32>
      %72 = arith.truncf %69 : vector<2x16x32xf32> to vector<2x16x32xbf16>
      %73 = arith.truncf %70 : vector<2x16x32xf32> to vector<2x16x32xbf16>
      "tpu.trace_start"() <{level = 10 : i32, message = "bqd,bkd->bqk"}> : () -> ()
      %cst_40 = arith.constant dense<0.000000e+00> : vector<2x16x16xf32>
      %74 = tpu.matmul %72, %73, %cst_40 {dimension_numbers = #tpu.dot_dimension_numbers<[2], [2], [1], [1], [0, 0, 0, 1, 1, 1], [0], [0]>} : vector<2x16x32xbf16>, vector<2x16x32xbf16>, vector<2x16x16xf32> -> vector<2x16x16xf32>
      "tpu.trace_stop"() : () -> ()
      %75 = tpu.iota {dimensions = array<i32: 0>} : vector<16x16xi32>
      %76 = tpu.iota {dimensions = array<i32: 1>} : vector<16x16xi32>
      %77 = arith.cmpi sle, %76, %75 : vector<16x16xi32>
      %cst_41 = arith.constant 0.000000e+00 : f32
      %cst_42 = arith.constant -1.000000e+30 : f32
      %78 = vector.broadcast %cst_41 : f32 to vector<16x16xf32>
      %79 = vector.broadcast %cst_42 : f32 to vector<16x16xf32>
      %80 = arith.select %77, %78, %79 : vector<16x16xi1>, vector<16x16xf32>
      %81 = vector.shape_cast %80 : vector<16x16xf32> to vector<1x16x16xf32>
      %82 = vector.broadcast %81 : vector<1x16x16xf32> to vector<2x16x16xf32>
      %83 = arith.addf %74, %82 : vector<2x16x16xf32>
      %c0_43 = arith.constant 0 : index
      %c0_44 = arith.constant 0 : index
      %c0_45 = arith.constant 0 : index
      %84 = vector.load %arg4[%c0_43, %c0_44, %c0_45] : memref<2x1x16xf32, #tpu.memory_space<vmem>>, vector<2x1x16xf32>
      %85 = vector.broadcast %84 : vector<2x1x16xf32> to vector<2x16x16xf32>
      %86 = arith.addf %83, %85 : vector<2x16x16xf32>
      %cst_46 = arith.constant dense<0xFF800000> : vector<2x16xf32>
      %87 = vector.multi_reduction <maximumf>, %86, %cst_46 [2] : vector<2x16x16xf32> to vector<2x16xf32>
      %88 = vector.shape_cast %87 : vector<2x16xf32> to vector<2x16x1xf32>
      %89 = vector.broadcast %88 : vector<2x16x1xf32> to vector<2x16x16xf32>
      %90 = arith.subf %86, %89 : vector<2x16x16xf32>
      %91 = math.exp %90 : vector<2x16x16xf32>
      %cst_47 = arith.constant dense<0.000000e+00> : vector<2x16xf32>
      %92 = vector.multi_reduction <add>, %91, %cst_47 [2] : vector<2x16x16xf32> to vector<2x16xf32>
      %93 = vector.shape_cast %92 : vector<2x16xf32> to vector<2x16x1xf32>
      %94 = tpu.reciprocal %93 {approx = true} : vector<2x16x1xf32> -> vector<2x16x1xf32>
      %95 = vector.broadcast %94 : vector<2x16x1xf32> to vector<2x16x16xf32>
      %96 = arith.mulf %91, %95 : vector<2x16x16xf32>
      %97 = arith.truncf %96 : vector<2x16x16xf32> to vector<2x16x16xbf16>
      %98 = arith.truncf %71 : vector<2x16x32xf32> to vector<2x16x32xbf16>
      "tpu.trace_start"() <{level = 10 : i32, message = "bqk,bkd->bqd"}> : () -> ()
      %cst_48 = arith.constant dense<0.000000e+00> : vector<2x16x32xf32>
      %99 = tpu.matmul %97, %98, %cst_48 {dimension_numbers = #tpu.dot_dimension_numbers<[2], [1], [1], [2], [0, 0, 0, 1, 1, 2], [0], [0]>} : vector<2x16x16xbf16>, vector<2x16x32xbf16>, vector<2x16x32xf32> -> vector<2x16x32xf32>
      "tpu.trace_stop"() : () -> ()
      %100 = arith.addf %63, %99 : vector<2x16x32xf32>
      %101 = vector.extract_strided_slice %100 {offsets = [0, 1, 0], sizes = [2, 8, 32], strides = [1, 1, 1]} : vector<2x16x32xf32> to vector<2x8x32xf32>
      %102 = vector.shape_cast %101 : vector<2x8x32xf32> to vector<16x32xf32>
      %103 = arith.truncf %102 : vector<16x32xf32> to vector<16x32xbf16>
      %c0_49 = arith.constant 0 : index
      %c0_50 = arith.constant 0 : index
      %104 = vector.load %arg14[%c0_49, %c0_50] : memref<16x32xbf16, #tpu.memory_space<vmem>>, vector<16x32xbf16>
      tpu.vector_store %arg14[%c0_49, %c0_50], %103 {strides = array<i32>} : memref<16x32xbf16, #tpu.memory_space<vmem>>, vector<16x32xbf16>,
    } else {
    }
    %c0 = arith.constant 0 : index
    %c0_1 = arith.constant 0 : index
    %3 = vector.load %arg14[%c0, %c0_1] : memref<16x32xbf16, #tpu.memory_space<vmem>>, vector<16x32xbf16>
    %c0_2 = arith.constant 0 : index
    %c0_3 = arith.constant 0 : index
    %4 = vector.load %arg12[%c0_2, %c0_3] : memref<32x128xbf16, #tpu.memory_space<vmem>>, vector<32x128xbf16>
    %cst = arith.constant dense<0.000000e+00> : vector<16x128xf32>
    %5 = tpu.matmul %3, %4, %cst {dimension_numbers = #tpu.dot_dimension_numbers<[1], [0], [0], [1], [0, 0, 1, 1], [], []>} : vector<16x32xbf16>, vector<32x128xbf16>, vector<16x128xf32> -> vector<16x128xf32>
    %6 = vector.shape_cast %5 : vector<16x128xf32> to vector<2x8x128xf32>
    %c0_4 = arith.constant 0 : index
    %c0_5 = arith.constant 0 : index
    %c0_6 = arith.constant 0 : index
    %7 = vector.load %arg13[%c0_4, %c0_5, %c0_6] : memref<2x8x128xf32, #tpu.memory_space<vmem>>, vector<2x8x128xf32>
    tpu.vector_store %arg13[%c0_4, %c0_5, %c0_6], %6 {strides = array<i32>} : memref<2x8x128xf32, #tpu.memory_space<vmem>>, vector<2x8x128xf32>,
    return
  }
  func.func @transform_0(%arg0: i32, %arg1: i32) -> (i32, i32, i32) {
    %c0_i32 = arith.constant 0 : i32
    %c0_i32_0 = arith.constant 0 : i32
    %c0_i32_1 = arith.constant 0 : i32
    return %arg0, %c0_i32, %c0_i32_0 : i32, i32, i32
  }
  func.func @transform_1(%arg0: i32, %arg1: i32) -> (i32, i32, i32) {
    %c0_i32 = arith.constant 0 : i32
    %c0_i32_0 = arith.constant 0 : i32
    %c0_i32_1 = arith.constant 0 : i32
    return %arg0, %c0_i32, %c0_i32_0 : i32, i32, i32
  }
  func.func @transform_2(%arg0: i32, %arg1: i32) -> (i32, i32, i32) {
    %c0_i32 = arith.constant 0 : i32
    %c0_i32_0 = arith.constant 0 : i32
    %c0_i32_1 = arith.constant 0 : i32
    return %arg0, %c0_i32, %c0_i32_0 : i32, i32, i32
  }
  func.func @transform_3(%arg0: i32, %arg1: i32) -> (i32, i32) {
    %c0_i32 = arith.constant 0 : i32
    %c0_i32_0 = arith.constant 0 : i32
    %c0_i32_1 = arith.constant 0 : i32
    return %c0_i32, %c0_i32_0 : i32, i32
  }
  func.func @transform_4(%arg0: i32, %arg1: i32) -> (i32, i32) {
    %c0_i32 = arith.constant 0 : i32
    %c0_i32_0 = arith.constant 0 : i32
    %c0_i32_1 = arith.constant 0 : i32
    return %c0_i32, %c0_i32_0 : i32, i32
  }
  func.func @transform_5(%arg0: i32, %arg1: i32) -> (i32, i32) {
    %c0_i32 = arith.constant 0 : i32
    %c0_i32_0 = arith.constant 0 : i32
    %c0_i32_1 = arith.constant 0 : i32
    return %c0_i32, %c0_i32_0 : i32, i32
  }
  func.func @transform_6(%arg0: i32, %arg1: i32) -> (i32, i32) {
    %c0_i32 = arith.constant 0 : i32
    %c0_i32_0 = arith.constant 0 : i32
    %c0_i32_1 = arith.constant 0 : i32
    return %c0_i32, %c0_i32_0 : i32, i32
  }
  func.func @transform_7(%arg0: i32, %arg1: i32) -> (i32, i32) {
    %c0_i32 = arith.constant 0 : i32
    %c0_i32_0 = arith.constant 0 : i32
    %c0_i32_1 = arith.constant 0 : i32
    return %c0_i32, %c0_i32_0 : i32, i32
  }
  func.func @transform_8(%arg0: i32, %arg1: i32) -> (i32, i32) {
    %c0_i32 = arith.constant 0 : i32
    %c0_i32_0 = arith.constant 0 : i32
    %c0_i32_1 = arith.constant 0 : i32
    return %c0_i32, %c0_i32_0 : i32, i32
  }
  func.func @transform_9(%arg0: i32, %arg1: i32) -> (i32, i32) {
    %c0_i32 = arith.constant 0 : i32
    %c0_i32_0 = arith.constant 0 : i32
    %c0_i32_1 = arith.constant 0 : i32
    return %c0_i32, %c0_i32_0 : i32, i32
  }
  func.func @transform_10(%arg0: i32, %arg1: i32) -> (i32, i32) {
    %c0_i32 = arith.constant 0 : i32
    %c0_i32_0 = arith.constant 0 : i32
    return %c0_i32, %arg1 : i32, i32
  }
  func.func @transform_11(%arg0: i32, %arg1: i32) -> (i32, i32, i32) {
    %c0_i32 = arith.constant 0 : i32
    %c0_i32_0 = arith.constant 0 : i32
    return %arg0, %c0_i32, %arg1 : i32, i32, i32
  }
}

module attributes {stable_mosaic.version = 11 : i64} {
  func.func @cross_model_kernel(%arg0: i32, %arg1: i32, %arg2: memref<2x1x32xf32, #tpu.memory_space<vmem>>, %arg3: memref<2x16x32xf32, #tpu.memory_space<vmem>>, %arg4: memref<2x1x16xf32, #tpu.memory_space<vmem>>, %arg5: memref<32x32xbf16, #tpu.memory_space<vmem>>, %arg6: memref<1x32xf32, #tpu.memory_space<vmem>>, %arg7: memref<32x64xbf16, #tpu.memory_space<vmem>>, %arg8: memref<1x64xf32, #tpu.memory_space<vmem>>, %arg9: memref<64x32xbf16, #tpu.memory_space<vmem>>, %arg10: memref<1x32xf32, #tpu.memory_space<vmem>>, %arg11: memref<32x96xbf16, #tpu.memory_space<vmem>>, %arg12: memref<32x128xbf16, #tpu.memory_space<vmem>>, %arg13: memref<2x8x128xf32, #tpu.memory_space<vmem>>, %arg14: memref<16x32xbf16, #tpu.memory_space<vmem>>) attributes {dimension_semantics = [#tpu.dimension_semantics<parallel>, #tpu.dimension_semantics<arbitrary>], iteration_bounds = array<i64: 2, 2>, scalar_prefetch = 0 : i64, scratch_operands = 1 : i64, tpu.core_type = #tpu.core_type<tc>, window_params = [{transform_indices = @transform_0, window_bounds = array<i64: 2, 1, 32>}, {transform_indices = @transform_1, window_bounds = array<i64: 2, 16, 32>}, {transform_indices = @transform_2, window_bounds = array<i64: 2, 1, 16>}, {pipeline_mode = #tpu.pipeline_mode<synchronous>, transform_indices = @transform_3, window_bounds = array<i64: 32, 32>}, {pipeline_mode = #tpu.pipeline_mode<synchronous>, transform_indices = @transform_4, window_bounds = array<i64: 1, 32>}, {pipeline_mode = #tpu.pipeline_mode<synchronous>, transform_indices = @transform_5, window_bounds = array<i64: 32, 64>}, {pipeline_mode = #tpu.pipeline_mode<synchronous>, transform_indices = @transform_6, window_bounds = array<i64: 1, 64>}, {pipeline_mode = #tpu.pipeline_mode<synchronous>, transform_indices = @transform_7, window_bounds = array<i64: 64, 32>}, {pipeline_mode = #tpu.pipeline_mode<synchronous>, transform_indices = @transform_8, window_bounds = array<i64: 1, 32>}, {pipeline_mode = #tpu.pipeline_mode<synchronous>, transform_indices = @transform_9, window_bounds = array<i64: 32, 96>}, {transform_indices = @transform_10, window_bounds = array<i64: 32, 128>}, {transform_indices = @transform_11, window_bounds = array<i64: 2, 8, 128>}]} {
    %c0_i32 = arith.constant 0 : i32
    %0 = arith.cmpi eq, %arg1, %c0_i32 : i32
    %1 = arith.extui %0 : i1 to i32
    %c0_i32_0 = arith.constant 0 : i32
    %2 = arith.cmpi ne, %1, %c0_i32_0 : i32
    scf.if %2 {
      %c0_7 = arith.constant 0 : index
      %c0_8 = arith.constant 0 : index
      %c0_9 = arith.constant 0 : index
      %8 = vector.load %arg2[%c0_7, %c0_8, %c0_9] : memref<2x1x32xf32, #tpu.memory_space<vmem>>, vector<2x1x32xf32>
      %9 = vector.shape_cast %8 : vector<2x1x32xf32> to vector<2x32xf32>
      %10 = arith.truncf %9 : vector<2x32xf32> to vector<2x32xbf16>
      %c0_10 = arith.constant 0 : index
      %c0_11 = arith.constant 0 : index
      %11 = vector.load %arg5[%c0_10, %c0_11] : memref<32x32xbf16, #tpu.memory_space<vmem>>, vector<32x32xbf16>
      %cst_12 = arith.constant dense<0.000000e+00> : vector<2x32xf32>
      %12 = tpu.matmul %10, %11, %cst_12 {dimension_numbers = #tpu.dot_dimension_numbers<[1], [0], [0], [1], [0, 0, 1, 1], [], []>} : vector<2x32xbf16>, vector<32x32xbf16>, vector<2x32xf32> -> vector<2x32xf32>
      %c0_13 = arith.constant 0 : index
      %c0_14 = arith.constant 0 : index
      %13 = vector.load %arg6[%c0_13, %c0_14] : memref<1x32xf32, #tpu.memory_space<vmem>>, vector<1x32xf32>
      %14 = vector.broadcast %13 : vector<1x32xf32> to vector<2x32xf32>
      %15 = arith.addf %12, %14 : vector<2x32xf32>
      %16 = arith.mulf %15, %15 : vector<2x32xf32>
      %17 = arith.mulf %15, %16 : vector<2x32xf32>
      %cst_15 = arith.constant 4.471500e-02 : f32
      %18 = vector.broadcast %cst_15 : f32 to vector<2x32xf32>
      %19 = arith.mulf %18, %17 : vector<2x32xf32>
      %20 = arith.addf %15, %19 : vector<2x32xf32>
      %cst_16 = arith.constant 0.797884583 : f32
      %21 = vector.broadcast %cst_16 : f32 to vector<2x32xf32>
      %22 = arith.mulf %21, %20 : vector<2x32xf32>
      %23 = math.tanh %22 : vector<2x32xf32>
      %cst_17 = arith.constant 1.000000e+00 : f32
      %24 = vector.broadcast %cst_17 : f32 to vector<2x32xf32>
      %25 = arith.addf %24, %23 : vector<2x32xf32>
      %cst_18 = arith.constant 5.000000e-01 : f32
      %26 = vector.broadcast %cst_18 : f32 to vector<2x32xf32>
      %27 = arith.mulf %26, %25 : vector<2x32xf32>
      %28 = arith.mulf %15, %27 : vector<2x32xf32>
      %29 = arith.truncf %28 : vector<2x32xf32> to vector<2x32xbf16>
      %c0_19 = arith.constant 0 : index
      %c0_20 = arith.constant 0 : index
      %30 = vector.load %arg7[%c0_19, %c0_20] : memref<32x64xbf16, #tpu.memory_space<vmem>>, vector<32x64xbf16>
      %cst_21 = arith.constant dense<0.000000e+00> : vector<2x64xf32>
      %31 = tpu.matmul %29, %30, %cst_21 {dimension_numbers = #tpu.dot_dimension_numbers<[1], [0], [0], [1], [0, 0, 1, 1], [], []>} : vector<2x32xbf16>, vector<32x64xbf16>, vector<2x64xf32> -> vector<2x64xf32>
      %c0_22 = arith.constant 0 : index
      %c0_23 = arith.constant 0 : index
      %32 = vector.load %arg8[%c0_22, %c0_23] : memref<1x64xf32, #tpu.memory_space<vmem>>, vector<1x64xf32>
      %33 = vector.broadcast %32 : vector<1x64xf32> to vector<2x64xf32>
      %34 = arith.addf %31, %33 : vector<2x64xf32>
      %35 = arith.mulf %34, %34 : vector<2x64xf32>
      %36 = arith.mulf %34, %35 : vector<2x64xf32>
      %cst_24 = arith.constant 4.471500e-02 : f32
      %37 = vector.broadcast %cst_24 : f32 to vector<2x64xf32>
      %38 = arith.mulf %37, %36 : vector<2x64xf32>
      %39 = arith.addf %34, %38 : vector<2x64xf32>
      %cst_25 = arith.constant 0.797884583 : f32
      %40 = vector.broadcast %cst_25 : f32 to vector<2x64xf32>
      %41 = arith.mulf %40, %39 : vector<2x64xf32>
      %42 = math.tanh %41 : vector<2x64xf32>
      %cst_26 = arith.constant 1.000000e+00 : f32
      %43 = vector.broadcast %cst_26 : f32 to vector<2x64xf32>
      %44 = arith.addf %43, %42 : vector<2x64xf32>
      %cst_27 = arith.constant 5.000000e-01 : f32
      %45 = vector.broadcast %cst_27 : f32 to vector<2x64xf32>
      %46 = arith.mulf %45, %44 : vector<2x64xf32>
      %47 = arith.mulf %34, %46 : vector<2x64xf32>
      %48 = arith.truncf %47 : vector<2x64xf32> to vector<2x64xbf16>
      %c0_28 = arith.constant 0 : index
      %c0_29 = arith.constant 0 : index
      %49 = vector.load %arg9[%c0_28, %c0_29] : memref<64x32xbf16, #tpu.memory_space<vmem>>, vector<64x32xbf16>
      %cst_30 = arith.constant dense<0.000000e+00> : vector<2x32xf32>
      %50 = tpu.matmul %48, %49, %cst_30 {dimension_numbers = #tpu.dot_dimension_numbers<[1], [0], [0], [1], [0, 0, 1, 1], [], []>} : vector<2x64xbf16>, vector<64x32xbf16>, vector<2x32xf32> -> vector<2x32xf32>
      %c0_31 = arith.constant 0 : index
      %c0_32 = arith.constant 0 : index
      %51 = vector.load %arg10[%c0_31, %c0_32] : memref<1x32xf32, #tpu.memory_space<vmem>>, vector<1x32xf32>
      %52 = vector.broadcast %51 : vector<1x32xf32> to vector<2x32xf32>
      %53 = arith.addf %50, %52 : vector<2x32xf32>
      %c0_33 = arith.constant 0 : index
      %c0_34 = arith.constant 0 : index
      %c0_35 = arith.constant 0 : index
      %54 = vector.load %arg3[%c0_33, %c0_34, %c0_35] : memref<2x16x32xf32, #tpu.memory_space<vmem>>, vector<2x16x32xf32>
      %55 = tpu.iota {dimensions = array<i32: 1>} : vector<1x16x1xi32>
      %c0_i32_36 = arith.constant 0 : i32
      %56 = vector.broadcast %c0_i32_36 : i32 to vector<1x16x1xi32>
      %57 = arith.cmpi eq, %55, %56 : vector<1x16x1xi32>
      %58 = vector.shape_cast %53 : vector<2x32xf32> to vector<2x1x32xf32>
      %59 = vector.shape_cast %57 : vector<1x16x1xi1> to vector<1x16x1xi1>
      %60 = vector.broadcast %59 : vector<1x16x1xi1> to vector<2x16x32xi1>
      %61 = vector.shape_cast %58 : vector<2x1x32xf32> to vector<2x1x32xf32>
      %62 = vector.broadcast %61 : vector<2x1x32xf32> to vector<2x16x32xf32>
      %63 = arith.select %60, %62, %54 : vector<2x16x32xi1>, vector<2x16x32xf32>
      %64 = vector.shape_cast %63 : vector<2x16x32xf32> to vector<32x32xf32>
      %65 = arith.truncf %64 : vector<32x32xf32> to vector<32x32xbf16>
      %c0_37 = arith.constant 0 : index
      %c0_38 = arith.constant 0 : index
      %66 = vector.load %arg11[%c0_37, %c0_38] : memref<32x96xbf16, #tpu.memory_space<vmem>>, vector<32x96xbf16>
      %cst_39 = arith.constant dense<0.000000e+00> : vector<32x96xf32>
      %67 = tpu.matmul %65, %66, %cst_39 {dimension_numbers = #tpu.dot_dimension_numbers<[1], [0], [0], [1], [0, 0, 1, 1], [], []>} : vector<32x32xbf16>, vector<32x96xbf16>, vector<32x96xf32> -> vector<32x96xf32>
      %68 = vector.shape_cast %67 : vector<32x96xf32> to vector<2x16x96xf32>
      %69 = vector.extract_strided_slice %68 {offsets = [0, 0, 0], sizes = [2, 16, 32], strides = [1, 1, 1]} : vector<2x16x96xf32> to vector<2x16x32xf32>
      %70 = vector.extract_strided_slice %68 {offsets = [0, 0, 32], sizes = [2, 16, 32], strides = [1, 1, 1]} : vector<2x16x96xf32> to vector<2x16x32xf32>
      %71 = vector.extract_strided_slice %68 {offsets = [0, 0, 64], sizes = [2, 16, 32], strides = [1, 1, 1]} : vector<2x16x96xf32> to vector<2x16x32xf32>
      %72 = arith.truncf %69 : vector<2x16x32xf32> to vector<2x16x32xbf16>
      %73 = arith.truncf %70 : vector<2x16x32xf32> to vector<2x16x32xbf16>
      "tpu.trace_start"() <{level = 10 : i32, message = "bqd,bkd->bqk"}> : () -> ()
      %cst_40 = arith.constant dense<0.000000e+00> : vector<2x16x16xf32>
      %74 = tpu.matmul %72, %73, %cst_40 {dimension_numbers = #tpu.dot_dimension_numbers<[2], [2], [1], [1], [0, 0, 0, 1, 1, 1], [0], [0]>} : vector<2x16x32xbf16>, vector<2x16x32xbf16>, vector<2x16x16xf32> -> vector<2x16x16xf32>
      "tpu.trace_stop"() : () -> ()
      %75 = tpu.iota {dimensions = array<i32: 0>} : vector<16x16xi32>
      %76 = tpu.iota {dimensions = array<i32: 1>} : vector<16x16xi32>
      %77 = arith.cmpi sle, %76, %75 : vector<16x16xi32>
      %cst_41 = arith.constant 0.000000e+00 : f32
      %cst_42 = arith.constant -1.000000e+30 : f32
      %78 = vector.broadcast %cst_41 : f32 to vector<16x16xf32>
      %79 = vector.broadcast %cst_42 : f32 to vector<16x16xf32>
      %80 = arith.select %77, %78, %79 : vector<16x16xi1>, vector<16x16xf32>
      %81 = vector.shape_cast %80 : vector<16x16xf32> to vector<1x16x16xf32>
      %82 = vector.broadcast %81 : vector<1x16x16xf32> to vector<2x16x16xf32>
      %83 = arith.addf %74, %82 : vector<2x16x16xf32>
      %c0_43 = arith.constant 0 : index
      %c0_44 = arith.constant 0 : index
      %c0_45 = arith.constant 0 : index
      %84 = vector.load %arg4[%c0_43, %c0_44, %c0_45] : memref<2x1x16xf32, #tpu.memory_space<vmem>>, vector<2x1x16xf32>
      %85 = vector.broadcast %84 : vector<2x1x16xf32> to vector<2x16x16xf32>
      %86 = arith.addf %83, %85 : vector<2x16x16xf32>
      %cst_46 = arith.constant dense<0xFF800000> : vector<2x16xf32>
      %87 = vector.multi_reduction <maximumf>, %86, %cst_46 [2] : vector<2x16x16xf32> to vector<2x16xf32>
      %88 = vector.shape_cast %87 : vector<2x16xf32> to vector<2x16x1xf32>
      %89 = vector.broadcast %88 : vector<2x16x1xf32> to vector<2x16x16xf32>
      %90 = arith.subf %86, %89 : vector<2x16x16xf32>
      %91 = math.exp %90 : vector<2x16x16xf32>
      %cst_47 = arith.constant dense<0.000000e+00> : vector<2x16xf32>
      %92 = vector.multi_reduction <add>, %91, %cst_47 [2] : vector<2x16x16xf32> to vector<2x16xf32>
      %93 = vector.shape_cast %92 : vector<2x16xf32> to vector<2x16x1xf32>
      %94 = tpu.reciprocal %93 {approx = true} : vector<2x16x1xf32> -> vector<2x16x1xf32>
      %95 = vector.broadcast %94 : vector<2x16x1xf32> to vector<2x16x16xf32>
      %96 = arith.mulf %91, %95 : vector<2x16x16xf32>
      %97 = arith.truncf %96 : vector<2x16x16xf32> to vector<2x16x16xbf16>
      %98 = arith.truncf %71 : vector<2x16x32xf32> to vector<2x16x32xbf16>
      "tpu.trace_start"() <{level = 10 : i32, message = "bqk,bkd->bqd"}> : () -> ()
      %cst_48 = arith.constant dense<0.000000e+00> : vector<2x16x32xf32>
      %99 = tpu.matmul %97, %98, %cst_48 {dimension_numbers = #tpu.dot_dimension_numbers<[2], [1], [1], [2], [0, 0, 0, 1, 1, 2], [0], [0]>} : vector<2x16x16xbf16>, vector<2x16x32xbf16>, vector<2x16x32xf32> -> vector<2x16x32xf32>
      "tpu.trace_stop"() : () -> ()
      %100 = arith.addf %63, %99 : vector<2x16x32xf32>
      %101 = vector.extract_strided_slice %100 {offsets = [0, 1, 0], sizes = [2, 8, 32], strides = [1, 1, 1]} : vector<2x16x32xf32> to vector<2x8x32xf32>
      %102 = vector.shape_cast %101 : vector<2x8x32xf32> to vector<16x32xf32>
      %103 = arith.truncf %102 : vector<16x32xf32> to vector<16x32xbf16>
      %c0_49 = arith.constant 0 : index
      %c0_50 = arith.constant 0 : index
      %104 = vector.load %arg14[%c0_49, %c0_50] : memref<16x32xbf16, #tpu.memory_space<vmem>>, vector<16x32xbf16>
      tpu.vector_store %arg14[%c0_49, %c0_50], %103 {strides = array<i32>} : memref<16x32xbf16, #tpu.memory_space<vmem>>, vector<16x32xbf16>,
    } else {
    }
    %c0 = arith.constant 0 : index
    %c0_1 = arith.constant 0 : index
    %3 = vector.load %arg14[%c0, %c0_1] : memref<16x32xbf16, #tpu.memory_space<vmem>>, vector<16x32xbf16>
    %c0_2 = arith.constant 0 : index
    %c0_3 = arith.constant 0 : index
    %4 = vector.load %arg12[%c0_2, %c0_3] : memref<32x128xbf16, #tpu.memory_space<vmem>>, vector<32x128xbf16>
    %cst = arith.constant dense<0.000000e+00> : vector<16x128xf32>
    %5 = tpu.matmul %3, %4, %cst {dimension_numbers = #tpu.dot_dimension_numbers<[1], [0], [0], [1], [0, 0, 1, 1], [], []>} : vector<16x32xbf16>, vector<32x128xbf16>, vector<16x128xf32> -> vector<16x128xf32>
    %6 = vector.shape_cast %5 : vector<16x128xf32> to vector<2x8x128xf32>
    %c0_4 = arith.constant 0 : index
    %c0_5 = arith.constant 0 : index
    %c0_6 = arith.constant 0 : index
    %7 = vector.load %arg13[%c0_4, %c0_5, %c0_6] : memref<2x8x128xf32, #tpu.memory_space<vmem>>, vector<2x8x128xf32>
    tpu.vector_store %arg13[%c0_4, %c0_5, %c0_6], %6 {strides = array<i32>} : memref<2x8x128xf32, #tpu.memory_space<vmem>>, vector<2x8x128xf32>,
    return
  }
  func.func @transform_0(%arg0: i32, %arg1: i32) -> (i32, i32, i32) {
    %c0_i32 = arith.constant 0 : i32
    %c0_i32_0 = arith.constant 0 : i32
    %c0_i32_1 = arith.constant 0 : i32
    return %arg0, %c0_i32, %c0_i32_0 : i32, i32, i32
  }
  func.func @transform_1(%arg0: i32, %arg1: i32) -> (i32, i32, i32) {
    %c0_i32 = arith.constant 0 : i32
    %c0_i32_0 = arith.constant 0 : i32
    %c0_i32_1 = arith.constant 0 : i32
    return %arg0, %c0_i32, %c0_i32_0 : i32, i32, i32
  }
  func.func @transform_2(%arg0: i32, %arg1: i32) -> (i32, i32, i32) {
    %c0_i32 = arith.constant 0 : i32
    %c0_i32_0 = arith.constant 0 : i32
    %c0_i32_1 = arith.constant 0 : i32
    return %arg0, %c0_i32, %c0_i32_0 : i32, i32, i32
  }
  func.func @transform_3(%arg0: i32, %arg1: i32) -> (i32, i32) {
    %c0_i32 = arith.constant 0 : i32
    %c0_i32_0 = arith.constant 0 : i32
    %c0_i32_1 = arith.constant 0 : i32
    return %c0_i32, %c0_i32_0 : i32, i32
  }
  func.func @transform_4(%arg0: i32, %arg1: i32) -> (i32, i32) {
    %c0_i32 = arith.constant 0 : i32
    %c0_i32_0 = arith.constant 0 : i32
    %c0_i32_1 = arith.constant 0 : i32
    return %c0_i32, %c0_i32_0 : i32, i32
  }
  func.func @transform_5(%arg0: i32, %arg1: i32) -> (i32, i32) {
    %c0_i32 = arith.constant 0 : i32
    %c0_i32_0 = arith.constant 0 : i32
    %c0_i32_1 = arith.constant 0 : i32
    return %c0_i32, %c0_i32_0 : i32, i32
  }
  func.func @transform_6(%arg0: i32, %arg1: i32) -> (i32, i32) {
    %c0_i32 = arith.constant 0 : i32
    %c0_i32_0 = arith.constant 0 : i32
    %c0_i32_1 = arith.constant 0 : i32
    return %c0_i32, %c0_i32_0 : i32, i32
  }
  func.func @transform_7(%arg0: i32, %arg1: i32) -> (i32, i32) {
    %c0_i32 = arith.constant 0 : i32
    %c0_i32_0 = arith.constant 0 : i32
    %c0_i32_1 = arith.constant 0 : i32
    return %c0_i32, %c0_i32_0 : i32, i32
  }
  func.func @transform_8(%arg0: i32, %arg1: i32) -> (i32, i32) {
    %c0_i32 = arith.constant 0 : i32
    %c0_i32_0 = arith.constant 0 : i32
    %c0_i32_1 = arith.constant 0 : i32
    return %c0_i32, %c0_i32_0 : i32, i32
  }
  func.func @transform_9(%arg0: i32, %arg1: i32) -> (i32, i32) {
    %c0_i32 = arith.constant 0 : i32
    %c0_i32_0 = arith.constant 0 : i32
    %c0_i32_1 = arith.constant 0 : i32
    return %c0_i32, %c0_i32_0 : i32, i32
  }
  func.func @transform_10(%arg0: i32, %arg1: i32) -> (i32, i32) {
    %c0_i32 = arith.constant 0 : i32
    %c0_i32_0 = arith.constant 0 : i32
    return %c0_i32, %arg1 : i32, i32
  }
  func.func @transform_11(%arg0: i32, %arg1: i32) -> (i32, i32, i32) {
    %c0_i32 = arith.constant 0 : i32
    %c0_i32_0 = arith.constant 0 : i32
    return %arg0, %c0_i32, %arg1 : i32, i32, i32
  }
}

</mosaic_0001>

<llo_original>
// kernel: tpu_custom_call.1
$region0: #{tpu_custom_call.1}
  #allocation0 [shape = 'u32[]', space=smem, size = 0x4, offset = 0x4, fixed_abs, tag = 'smem constant byte address 0x4 - core index']
  #allocation1 [shape = 'u32[72,128]{1,0:T(1,128)}', space=vmem, size = 0x9000, scoped, tag = 'internal scratch']
  #allocation2 [shape = 'bf16[16,32]{1,0:T(8,128)(2,1)}', space=vmem, size = 0x1000, scoped, tag = 'scratch operand']
  %s0 = inlined_call_operand.vmem [shape: f32[4,1,32], index: 0, kind: input, shape index: {}]
  %s1 = inlined_call_operand.hbm [shape: f32[4,16,32], index: 1, kind: input, shape index: {}]
  %s2 = inlined_call_operand.vmem [shape: f32[4,1,16], index: 2, kind: input, shape index: {}]
  %s3 = inlined_call_operand.vmem [shape: bf16[32,32], index: 3, kind: input, shape index: {}]
  %s4 = inlined_call_operand.vmem [shape: f32[1,32], index: 4, kind: input, shape index: {}]
  %s5 = inlined_call_operand.hbm [shape: bf16[32,64], index: 5, kind: input, shape index: {}]
  %s6 = inlined_call_operand.hbm [shape: f32[1,64], index: 6, kind: input, shape index: {}]
  %s7 = inlined_call_operand.vmem [shape: bf16[64,32], index: 7, kind: input, shape index: {}]
  %s8 = inlined_call_operand.hbm [shape: f32[1,32], index: 8, kind: input, shape index: {}]
  %s9 = inlined_call_operand.hbm [shape: bf16[32,96], index: 9, kind: input, shape index: {}]
  %s10 = inlined_call_operand.vmem [shape: bf16[32,256], index: 10, kind: input, shape index: {}]
  %s11 = inlined_call_operand.hbm [shape: f32[4,8,256], index: 11, kind: output, shape index: {}]
  %s12 = sld [smem:[#allocation0]]
  $region142: #{tpu_custom_call.1} parent=0
    _
  %s14 = ssub.s32 1, %s12
  %s15 = scalar_select 0, %s14, %s12
  $region1: #{tpu_custom_call.1} parent=0
    #allocation3 [shape = 'u8[32768]{0}', space=vmem, size = 0x8000, scoped, tag = 'input window, operand 1']
    #allocation4 [shape = 's32[2]{0}', space=sflag, size = 0x8, scoped, tag = 'scoped memory for tpu_custom_call.1']
    #allocation5 [shape = 's32[2]{0}', space=sflag, size = 0x8, scoped, tag = 'scoped memory for tpu_custom_call.1']
    #allocation6 [shape = 'u8[8192]{0}', space=vmem, size = 0x2000, scoped, tag = 'input window, operand 5, single buffered']
    #allocation7 [shape = 's32[1]{0}', space=sflag, size = 0x4, scoped, tag = 'scoped memory for tpu_custom_call.1']
    #allocation8 [shape = 'u8[512]{0}', space=vmem, size = 0x400, scoped, tag = 'input window, operand 6, single buffered']
    #allocation9 [shape = 'u8[512]{0}', space=vmem, size = 0x400, scoped, tag = 'input window, operand 8, single buffered']
    #allocation10 [shape = 's32[1]{0}', space=sflag, size = 0x4, scoped, tag = 'scoped memory for tpu_custom_call.1']
    #allocation11 [shape = 'u8[8192]{0}', space=vmem, size = 0x2000, scoped, tag = 'input window, operand 9, single buffered']
    #allocation12 [shape = 'u8[16384]{0}', space=vmem, size = 0x4000, scoped, tag = 'input window, operand 10']
    #allocation13 [shape = 'u8[16384]{0}', space=vmem, size = 0x4000, scoped, tag = 'output window, operand 0']
    %16 = vsyncpa [#allocation4], 0
    %s17 = scalar_lea.sflag [#allocation4], 1
    %18 = vsyncpa %s17, 0
    %19 = vsyncpa [#allocation7], 0
    %20 = vsyncpa [#allocation10], 0
    %21 = vsyncpa [#allocation5], 0
    %s22 = scalar_lea.sflag [#allocation5], 1
    %23 = vsyncpa %s22, 0
    loop: start=0, step=1, limit=6
    $region2: #{tpu_custom_call.1} parent=1 // loop_pre_header
      _
    $region3: #{tpu_custom_call.1} parent=1 // loop_header
      %s25 = sphi 0, %s29
      %p26 = scmp.ge.s32.totalorder %s25, 6
      %s32 = sphi 0, %s44
      %s33 = sphi 0, %s40
      %s34 = sphi 0, %s32
      %s35 = sphi 0, %s33
      %s36 = sphi 0, %s34
      %s37 = sphi 0, %s35
      %s47 = sphi 0, %s49
      %s50 = sphi 0, %s47
      %s51 = sphi 0, %s50
      %s67 = sphi 0, %s51
      %s73 = sphi 0, %s75
      %s76 = sphi 0, %s73
      %s77 = sphi 0, %s76
      %s93 = sphi 0, %s77
      %s99 = sphi 0, %s101
      %s102 = sphi 0, %s99
      %s103 = sphi 0, %s102
      %s119 = sphi 0, %s103
      %s123 = sphi 0, %s123
      %s125 = sphi 0, %s123
      %s126 = sphi 0, %s125
      %s140 = sphi 0, %s126
      %s144 = sphi 0, %s144
      %s146 = sphi 0, %s144
      %s147 = sphi 0, %s146
      %s161 = sphi 0, %s147
      %s165 = sphi 0, %s165
      %s167 = sphi 0, %s165
      %s168 = sphi 0, %s167
      %s182 = sphi 0, %s168
      %s186 = sphi 0, %s186
      %s188 = sphi 0, %s186
      %s189 = sphi 0, %s188
      %s203 = sphi 0, %s189
      %s207 = sphi 0, %s207
      %s209 = sphi 0, %s207
      %s210 = sphi 0, %s209
      %s224 = sphi 0, %s210
      %s228 = sphi 0, %s228
      %s230 = sphi 0, %s228
      %s231 = sphi 0, %s230
      %s245 = sphi 0, %s231
      %s249 = sphi 0, %s249
      %s251 = sphi 0, %s249
      %s252 = sphi 0, %s251
      %s266 = sphi 0, %s252
      %s272 = sphi 0, %s274
      %s275 = sphi 0, %s272
      %s276 = sphi 0, %s275
      %s292 = sphi 0, %s276
      %s300 = sphi 0, %s302
      %s303 = sphi 0, %s300
      %s304 = sphi 0, %s303
      %s320 = sphi 0, %s304
    $region4: #{tpu_custom_call.1} parent=1 // loop_header_branch
      %28 = sbr.rel (%p26) target = $region8
    $region5: #{tpu_custom_call.1} parent=1 // loop_body
      %s30 = ssub.s32 %s25, 1
      %s31 = ssub.s32 %s25, 2
      %s38 = sadd.s32 1, %s33
      %p39 = scmp.ge.s32.totalorder %s38, 2
      %s40 = scalar_select %p39, 0, %s38
      %s41 = sadd.s32 1, %s32
      %s42 = scalar_select %p39, %s41, %s32
      %p43 = scmp.ge.s32.totalorder %s42, 2
      %s44 = scalar_select %p43, 0, %s42
      %s45 = ssub.s32 %s32, %s44
      %p46 = scmp.eq.s32.totalorder %s45, 0
      %s48 = sadd.s32 %s47, 1
      %s49 = scalar_select %p46, %s47, %s48
      %p52 = pneg %p46
      %p53 = scmp.eq.s32.totalorder %s25, 3
      %p54 = por %p52, %p53
      %p55 = scmp.ne.s32.totalorder %s47, %s50
      %p56 = scmp.eq.s32.totalorder %s25, 0
      %p57 = por %p55, %p56
      %p58 = scmp.ne.s32.totalorder %s47, %s50
      %p59 = scmp.eq.s32.totalorder %s30, 3
      %p60 = por %p58, %p59
      %p61 = scmp.ne.s32.totalorder %s50, %s51
      %p62 = scmp.eq.s32.totalorder %s30, 0
      %p63 = por %p61, %p62
      %p64 = scmp.ne.s32.totalorder %s50, %s51
      %p65 = scmp.eq.s32.totalorder %s31, 3
      %p66 = por %p64, %p65
      %p68 = scmp.ne.s32.totalorder %s51, %s67
      %p69 = scmp.eq.s32.totalorder %s31, 0
      %p70 = por %p68, %p69
      %s71 = ssub.s32 %s32, %s44
      %p72 = scmp.eq.s32.totalorder %s71, 0
      %s74 = sadd.s32 %s73, 1
      %s75 = scalar_select %p72, %s73, %s74
      %p78 = pneg %p72
      %p79 = scmp.eq.s32.totalorder %s25, 3
      %p80 = por %p78, %p79
      %p81 = scmp.ne.s32.totalorder %s73, %s76
      %p82 = scmp.eq.s32.totalorder %s25, 0
      %p83 = por %p81, %p82
      %p84 = scmp.ne.s32.totalorder %s73, %s76
      %p85 = scmp.eq.s32.totalorder %s30, 3
      %p86 = por %p84, %p85
      %p87 = scmp.ne.s32.totalorder %s76, %s77
      %p88 = scmp.eq.s32.totalorder %s30, 0
      %p89 = por %p87, %p88
      %p90 = scmp.ne.s32.totalorder %s76, %s77
      %p91 = scmp.eq.s32.totalorder %s31, 3
      %p92 = por %p90, %p91
      %p94 = scmp.ne.s32.totalorder %s77, %s93
      %p95 = scmp.eq.s32.totalorder %s31, 0
      %p96 = por %p94, %p95
      %s97 = ssub.s32 %s32, %s44
      %p98 = scmp.eq.s32.totalorder %s97, 0
      %s100 = sadd.s32 %s99, 1
      %s101 = scalar_select %p98, %s99, %s100
      %p104 = pneg %p98
      %p105 = scmp.eq.s32.totalorder %s25, 3
      %p106 = por %p104, %p105
      %p107 = scmp.ne.s32.totalorder %s99, %s102
      %p108 = scmp.eq.s32.totalorder %s25, 0
      %p109 = por %p107, %p108
      %p110 = scmp.ne.s32.totalorder %s99, %s102
      %p111 = scmp.eq.s32.totalorder %s30, 3
      %p112 = por %p110, %p111
      %p113 = scmp.ne.s32.totalorder %s102, %s103
      %p114 = scmp.eq.s32.totalorder %s30, 0
      %p115 = por %p113, %p114
      %p116 = scmp.ne.s32.totalorder %s102, %s103
      %p117 = scmp.eq.s32.totalorder %s31, 3
      %p118 = por %p116, %p117
      %p120 = scmp.ne.s32.totalorder %s103, %s119
      %p121 = scmp.eq.s32.totalorder %s31, 0
      %p122 = por %p120, %p121
      %s124 = sadd.s32 %s123, 1
      %p127 = scmp.eq.s32.totalorder %s25, 3
      %p128 = scmp.ne.s32.totalorder %s123, %s125
      %p129 = scmp.eq.s32.totalorder %s25, 0
      %p130 = por %p128, %p129
      %p131 = scmp.ne.s32.totalorder %s123, %s125
      %p132 = scmp.eq.s32.totalorder %s30, 3
      %p133 = por %p131, %p132
      %p134 = scmp.ne.s32.totalorder %s125, %s126
      %p135 = scmp.eq.s32.totalorder %s30, 0
      %p136 = por %p134, %p135
      %p137 = scmp.ne.s32.totalorder %s125, %s126
      %p138 = scmp.eq.s32.totalorder %s31, 3
      %p139 = por %p137, %p138
      %p141 = scmp.ne.s32.totalorder %s126, %s140
      %p142 = scmp.eq.s32.totalorder %s31, 0
      %p143 = por %p141, %p142
      %s145 = sadd.s32 %s144, 1
      %p148 = scmp.eq.s32.totalorder %s25, 3
      %p149 = scmp.ne.s32.totalorder %s144, %s146
      %p150 = scmp.eq.s32.totalorder %s25, 0
      %p151 = por %p149, %p150
      %p152 = scmp.ne.s32.totalorder %s144, %s146
      %p153 = scmp.eq.s32.totalorder %s30, 3
      %p154 = por %p152, %p153
      %p155 = scmp.ne.s32.totalorder %s146, %s147
      %p156 = scmp.eq.s32.totalorder %s30, 0
      %p157 = por %p155, %p156
      %p158 = scmp.ne.s32.totalorder %s146, %s147
      %p159 = scmp.eq.s32.totalorder %s31, 3
      %p160 = por %p158, %p159
      %p162 = scmp.ne.s32.totalorder %s147, %s161
      %p163 = scmp.eq.s32.totalorder %s31, 0
      %p164 = por %p162, %p163
      %s166 = sadd.s32 %s165, 1
      %p169 = scmp.eq.s32.totalorder %s25, 3
      %p170 = scmp.ne.s32.totalorder %s165, %s167
      %p171 = scmp.eq.s32.totalorder %s25, 0
      %p172 = por %p170, %p171
      %p173 = scmp.ne.s32.totalorder %s165, %s167
      %p174 = scmp.eq.s32.totalorder %s30, 3
      %p175 = por %p173, %p174
      %p176 = scmp.ne.s32.totalorder %s167, %s168
      %p177 = scmp.eq.s32.totalorder %s30, 0
      %p178 = por %p176, %p177
      %p179 = scmp.ne.s32.totalorder %s167, %s168
      %p180 = scmp.eq.s32.totalorder %s31, 3
      %p181 = por %p179, %p180
      %p183 = scmp.ne.s32.totalorder %s168, %s182
      %p184 = scmp.eq.s32.totalorder %s31, 0
      %p185 = por %p183, %p184
      %s187 = sadd.s32 %s186, 1
      %p190 = scmp.eq.s32.totalorder %s25, 3
      %p191 = scmp.ne.s32.totalorder %s186, %s188
      %p192 = scmp.eq.s32.totalorder %s25, 0
      %p193 = por %p191, %p192
      %p194 = scmp.ne.s32.totalorder %s186, %s188
      %p195 = scmp.eq.s32.totalorder %s30, 3
      %p196 = por %p194, %p195
      %p197 = scmp.ne.s32.totalorder %s188, %s189
      %p198 = scmp.eq.s32.totalorder %s30, 0
      %p199 = por %p197, %p198
      %p200 = scmp.ne.s32.totalorder %s188, %s189
      %p201 = scmp.eq.s32.totalorder %s31, 3
      %p202 = por %p200, %p201
      %p204 = scmp.ne.s32.totalorder %s189, %s203
      %p205 = scmp.eq.s32.totalorder %s31, 0
      %p206 = por %p204, %p205
      %s208 = sadd.s32 %s207, 1
      %p211 = scmp.eq.s32.totalorder %s25, 3
      %p212 = scmp.ne.s32.totalorder %s207, %s209
      %p213 = scmp.eq.s32.totalorder %s25, 0
      %p214 = por %p212, %p213
      %p215 = scmp.ne.s32.totalorder %s207, %s209
      %p216 = scmp.eq.s32.totalorder %s30, 3
      %p217 = por %p215, %p216
      %p218 = scmp.ne.s32.totalorder %s209, %s210
      %p219 = scmp.eq.s32.totalorder %s30, 0
      %p220 = por %p218, %p219
      %p221 = scmp.ne.s32.totalorder %s209, %s210
      %p222 = scmp.eq.s32.totalorder %s31, 3
      %p223 = por %p221, %p222
      %p225 = scmp.ne.s32.totalorder %s210, %s224
      %p226 = scmp.eq.s32.totalorder %s31, 0
      %p227 = por %p225, %p226
      %s229 = sadd.s32 %s228, 1
      %p232 = scmp.eq.s32.totalorder %s25, 3
      %p233 = scmp.ne.s32.totalorder %s228, %s230
      %p234 = scmp.eq.s32.totalorder %s25, 0
      %p235 = por %p233, %p234
      %p236 = scmp.ne.s32.totalorder %s228, %s230
      %p237 = scmp.eq.s32.totalorder %s30, 3
      %p238 = por %p236, %p237
      %p239 = scmp.ne.s32.totalorder %s230, %s231
      %p240 = scmp.eq.s32.totalorder %s30, 0
      %p241 = por %p239, %p240
      %p242 = scmp.ne.s32.totalorder %s230, %s231
      %p243 = scmp.eq.s32.totalorder %s31, 3
      %p244 = por %p242, %p243
      %p246 = scmp.ne.s32.totalorder %s231, %s245
      %p247 = scmp.eq.s32.totalorder %s31, 0
      %p248 = por %p246, %p247
      %s250 = sadd.s32 %s249, 1
      %p253 = scmp.eq.s32.totalorder %s25, 3
      %p254 = scmp.ne.s32.totalorder %s249, %s251
      %p255 = scmp.eq.s32.totalorder %s25, 0
      %p256 = por %p254, %p255
      %p257 = scmp.ne.s32.totalorder %s249, %s251
      %p258 = scmp.eq.s32.totalorder %s30, 3
      %p259 = por %p257, %p258
      %p260 = scmp.ne.s32.totalorder %s251, %s252
      %p261 = scmp.eq.s32.totalorder %s30, 0
      %p262 = por %p260, %p261
      %p263 = scmp.ne.s32.totalorder %s251, %s252
      %p264 = scmp.eq.s32.totalorder %s31, 3
      %p265 = por %p263, %p264
      %p267 = scmp.ne.s32.totalorder %s252, %s266
      %p268 = scmp.eq.s32.totalorder %s31, 0
      %p269 = por %p267, %p268
      %s270 = ssub.s32 %s33, %s40
      %p271 = scmp.eq.s32.totalorder %s270, 0
      %s273 = sadd.s32 %s272, 1
      %s274 = scalar_select %p271, %s272, %s273
      %p277 = pneg %p271
      %p278 = scmp.eq.s32.totalorder %s25, 3
      %p279 = por %p277, %p278
      %p280 = scmp.ne.s32.totalorder %s272, %s275
      %p281 = scmp.eq.s32.totalorder %s25, 0
      %p282 = por %p280, %p281
      %p283 = scmp.ne.s32.totalorder %s272, %s275
      %p284 = scmp.eq.s32.totalorder %s30, 3
      %p285 = por %p283, %p284
      %p286 = scmp.ne.s32.totalorder %s275, %s276
      %p287 = scmp.eq.s32.totalorder %s30, 0
      %p288 = por %p286, %p287
      %p289 = scmp.ne.s32.totalorder %s275, %s276
      %p290 = scmp.eq.s32.totalorder %s31, 3
      %p291 = por %p289, %p290
      %p293 = scmp.ne.s32.totalorder %s276, %s292
      %p294 = scmp.eq.s32.totalorder %s31, 0
      %p295 = por %p293, %p294
      %s296 = ssub.s32 %s32, %s44
      %s297 = ssub.s32 %s33, %s40
      %s298 = sor.u32 %s296, %s297
      %p299 = scmp.eq.s32.totalorder %s298, 0
      %s301 = sadd.s32 %s300, 1
      %s302 = scalar_select %p299, %s300, %s301
      %p305 = pneg %p299
      %p306 = scmp.eq.s32.totalorder %s25, 3
      %p307 = por %p305, %p306
      %p308 = scmp.ne.s32.totalorder %s300, %s303
      %p309 = scmp.eq.s32.totalorder %s25, 0
      %p310 = por %p308, %p309
      %p311 = scmp.ne.s32.totalorder %s300, %s303
      %p312 = scmp.eq.s32.totalorder %s30, 3
      %p313 = por %p311, %p312
      %p314 = scmp.ne.s32.totalorder %s303, %s304
      %p315 = scmp.eq.s32.totalorder %s30, 0
      %p316 = por %p314, %p315
      %p317 = scmp.ne.s32.totalorder %s303, %s304
      %p318 = scmp.eq.s32.totalorder %s31, 3
      %p319 = por %p317, %p318
      %p321 = scmp.ne.s32.totalorder %s304, %s320
      %p322 = scmp.eq.s32.totalorder %s31, 0
      %p323 = por %p321, %p322
      %p324 = scmp.le.s32.totalorder 1, %s25
      %p325 = scmp.lt.s32.totalorder %s25, 5
      %p326 = pnand %p324, %p325
      %p327 = pneg %p326
      // Predicated region
      $region9: #{tpu_custom_call.1} parent=5 // pred_check
        _
      $region10: #{tpu_custom_call.1} parent=5 // pred_check_branch
        %329 = sbr.rel (%p326) target = $region12
      $region11: #{tpu_custom_call.1} parent=5 // pred_region
        %s330 = ssub.s32 %s25, 1
        // Predicated region
        $region13: #{tpu_custom_call.1} parent=11 // pred_check
          %p331 = pneg %p136
        $region14: #{tpu_custom_call.1} parent=11 // pred_check_branch
          %333 = sbr.rel (%p331) target = $region16
        $region15: #{tpu_custom_call.1} parent=11 // pred_region
          _
        $region16: #{tpu_custom_call.1} parent=11 // pred_fallthru
          _
        // Predicated region
        $region17: #{tpu_custom_call.1} parent=11 // pred_check
          %p334 = pneg %p157
        $region18: #{tpu_custom_call.1} parent=11 // pred_check_branch
          %336 = sbr.rel (%p334) target = $region20
        $region19: #{tpu_custom_call.1} parent=11 // pred_region
          _
        $region20: #{tpu_custom_call.1} parent=11 // pred_fallthru
          _
        // Predicated region
        $region21: #{tpu_custom_call.1} parent=11 // pred_check
          %p337 = pneg %p178
        $region22: #{tpu_custom_call.1} parent=11 // pred_check_branch
          %339 = sbr.rel (%p337) target = $region24
        $region23: #{tpu_custom_call.1} parent=11 // pred_region
          %341 = vsyncadd [#allocation7], 0
          %s342 = sshll.u32 %s5, 4
          %s343 = int_to_ptr.hbm [resolvable:$true] %s342
          %s344 = sshll.u32 [#allocation6], 4
          %s345 = int_to_ptr.vmem [resolvable:$true] %s344
          %350 = dma.hbm_to_vmem [thread:$0]  %s343, 256, %s345, [#allocation7], 64, 64, 4
        $region24: #{tpu_custom_call.1} parent=11 // pred_fallthru
          _
        // Predicated region
        $region25: #{tpu_custom_call.1} parent=11 // pred_check
          %p351 = pneg %p199
        $region26: #{tpu_custom_call.1} parent=11 // pred_check_branch
          %353 = sbr.rel (%p351) target = $region28
        $region27: #{tpu_custom_call.1} parent=11 // pred_region
          %355 = vsyncadd [#allocation7], 0
          %s357 = sshll.u32 %s6, 4
          %s358 = int_to_ptr.hbm [resolvable:$true] %s357
          %s359 = sshll.u32 [#allocation8], 4
          %s360 = int_to_ptr.vmem [resolvable:$true] %s359
          %362 = dma.hbm_to_vmem [thread:$0]  %s358, 16, %s360, [#allocation7]
        $region28: #{tpu_custom_call.1} parent=11 // pred_fallthru
          _
        // Predicated region
        $region29: #{tpu_custom_call.1} parent=11 // pred_check
          %p363 = pneg %p220
        $region30: #{tpu_custom_call.1} parent=11 // pred_check_branch
          %365 = sbr.rel (%p363) target = $region32
        $region31: #{tpu_custom_call.1} parent=11 // pred_region
          _
        $region32: #{tpu_custom_call.1} parent=11 // pred_fallthru
          _
        // Predicated region
        $region33: #{tpu_custom_call.1} parent=11 // pred_check
          %p366 = pneg %p241
        $region34: #{tpu_custom_call.1} parent=11 // pred_check_branch
          %368 = sbr.rel (%p366) target = $region36
        $region35: #{tpu_custom_call.1} parent=11 // pred_region
          %370 = vsyncadd [#allocation10], 0
          %s372 = sshll.u32 %s8, 4
          %s373 = int_to_ptr.hbm [resolvable:$true] %s372
          %s374 = sshll.u32 [#allocation9], 4
          %s375 = int_to_ptr.vmem [resolvable:$true] %s374
          %377 = dma.hbm_to_vmem [thread:$0]  %s373, 16, %s375, [#allocation10]
        $region36: #{tpu_custom_call.1} parent=11 // pred_fallthru
          _
        // Predicated region
        $region37: #{tpu_custom_call.1} parent=11 // pred_check
          %p378 = pneg %p262
        $region38: #{tpu_custom_call.1} parent=11 // pred_check_branch
          %380 = sbr.rel (%p378) target = $region40
        $region39: #{tpu_custom_call.1} parent=11 // pred_region
          %382 = vsyncadd [#allocation10], 0
          %s383 = sshll.u32 %s9, 4
          %s384 = int_to_ptr.hbm [resolvable:$true] %s383
          %s385 = sshll.u32 [#allocation11], 4
          %s386 = int_to_ptr.vmem [resolvable:$true] %s385
          %391 = dma.hbm_to_vmem [thread:$0]  %s384, 256, %s386, [#allocation10], 64, 64, 4
        $region40: #{tpu_custom_call.1} parent=11 // pred_fallthru
          _
      $region12: #{tpu_custom_call.1} parent=5 // pred_fallthru
        _
      %p392 = scmp.lt.s32.totalorder %s25, 4
      // Predicated region
      $region41: #{tpu_custom_call.1} parent=5 // pred_check
        %p393 = pneg %p392
      $region42: #{tpu_custom_call.1} parent=5 // pred_check_branch
        %395 = sbr.rel (%p393) target = $region44
      $region43: #{tpu_custom_call.1} parent=5 // pred_region
        // Predicated region
        $region45: #{tpu_custom_call.1} parent=43 // pred_check
          %p396 = pneg %p57
        $region46: #{tpu_custom_call.1} parent=43 // pred_check_branch
          %398 = sbr.rel (%p396) target = $region48
        $region47: #{tpu_custom_call.1} parent=43 // pred_region
          %s399 = smul.u32 2, %s32
          %p400 = scmp.lt.s32.totalorder %s399, 3
          %s401 = scalar_select %p400, %s399, 3
          %s402 = scalar_lea.vmem %s0, %s401
          %s403 = smul.u32 2, %s32
        $region48: #{tpu_custom_call.1} parent=43 // pred_fallthru
          _
        // Predicated region
        $region49: #{tpu_custom_call.1} parent=43 // pred_check
          %p404 = pneg %p83
        $region50: #{tpu_custom_call.1} parent=43 // pred_check_branch
          %406 = sbr.rel (%p404) target = $region52
        $region51: #{tpu_custom_call.1} parent=43 // pred_region
          %s407 = sand.u32 %s73, 1
          %s408 = scalar_lea.sflag [#allocation4], %s407
          %s409 = sand.u32 %s73, 1
          %s410 = smul.addr %s409, 32
          %s411 = scalar_lea.vmem [#allocation3], %s410
          %s412 = smul.u32 2, %s32
          %414 = vsyncadd %s408, 0
          %s415 = smul.addr %s412, 2
          %s416 = smul.addr %s415, 8
          %s417 = scalar_lea.hbm %s1, %s416
          %s418 = sshll.u32 %s417, 4
          %s419 = int_to_ptr.hbm [resolvable:$true] %s418
          %s420 = sshll.u32 %s411, 4
          %s421 = int_to_ptr.vmem [resolvable:$true] %s420
          %426 = dma.hbm_to_vmem [thread:$0]  %s419, 512, %s421, %s408, 128, 128, 8
        $region52: #{tpu_custom_call.1} parent=43 // pred_fallthru
          _
        // Predicated region
        $region53: #{tpu_custom_call.1} parent=43 // pred_check
          %p427 = pneg %p109
        $region54: #{tpu_custom_call.1} parent=43 // pred_check_branch
          %429 = sbr.rel (%p427) target = $region56
        $region55: #{tpu_custom_call.1} parent=43 // pred_region
          %s430 = smul.u32 2, %s32
          %p431 = scmp.lt.s32.totalorder %s430, 3
          %s432 = scalar_select %p431, %s430, 3
          %s433 = scalar_lea.vmem %s2, %s432
          %s434 = smul.u32 2, %s32
        $region56: #{tpu_custom_call.1} parent=43 // pred_fallthru
          _
        // Predicated region
        $region57: #{tpu_custom_call.1} parent=43 // pred_check
          %p435 = pneg %p282
        $region58: #{tpu_custom_call.1} parent=43 // pred_check_branch
          %437 = sbr.rel (%p435) target = $region60
        $region59: #{tpu_custom_call.1} parent=43 // pred_region
          %s438 = sand.u32 %s272, 1
          %s439 = sand.u32 %s272, 1
          %s440 = smul.addr %s439, 16
          %s441 = scalar_lea.vmem [#allocation12], %s440
          %s442 = smul.addr %s33, 4
          %s443 = scalar_lea.vmem %s10, %s442
          // Predicated region
          $region61: #{tpu_custom_call.1} parent=59 // pred_check
            _
          $region62: #{tpu_custom_call.1} parent=59 // pred_check_branch
            %445 = sbr.rel (0) target = $region64
          $region63: #{tpu_custom_call.1} parent=59 // pred_region
            // Predicated region
            $region65: #{tpu_custom_call.1} parent=63 // pred_check
              _
            $region66: #{tpu_custom_call.1} parent=63 // pred_check_branch
              %447 = sbr.rel target = $region68
            $region67: #{tpu_custom_call.1} parent=63 // pred_region
              // Predicated region
              $region80: #{tpu_custom_call.1} parent=67 // pred_check
                _
              $region81: #{tpu_custom_call.1} parent=67 // pred_check_branch
                %469 = sbr.rel (0) target = $region83
              $region82: #{tpu_custom_call.1} parent=67 // pred_region
                loop: start=0, step=1, limit=1
                $region84: #{tpu_custom_call.1} parent=82 // loop_pre_header
                  _
                $region85: #{tpu_custom_call.1} parent=82 // loop_header
                  %s471 = sphi 0, %s475
                  %p472 = scmp.ge.s32.totalorder %s471, 1
                  %s476 = sphi %s443, %s443
                  %s477 = sphi %s441, %s441
                $region86: #{tpu_custom_call.1} parent=82 // loop_header_branch
                  %474 = sbr.rel (%p472) target = $region90
                $region87: #{tpu_custom_call.1} parent=82 // loop_body
                  _
                $region88: #{tpu_custom_call.1} parent=82 // loop_footer
                  %s475 = sadd.s32 1, %s471
                $region89: #{tpu_custom_call.1} parent=82 // loop_footer_branch
                  %470 = sbr.rel target = $region85
                $region90: #{tpu_custom_call.1} parent=82 // loop_exit
                  _
                %s479 = ssub.s32 16, 1
                loop: start=0, step=1, limit=1
                $region91: #{tpu_custom_call.1} parent=82 // loop_pre_header
                  _
                $region92: #{tpu_custom_call.1} parent=82 // loop_header
                  %s481 = sphi 0, %s485
                  %p482 = scmp.ge.s32.totalorder %s481, 1
                  %s486 = sphi %s443, %s443
                  %s487 = sphi %s441, %s441
                $region93: #{tpu_custom_call.1} parent=82 // loop_header_branch
                  %484 = sbr.rel (%p482) target = $region97
                $region94: #{tpu_custom_call.1} parent=82 // loop_body
                  %v488 = vld [vmem:[%s486] sm:%s479]
                  %489 = vst [vmem:[%s487] sm:%s479] %v488
                  %v490 = vld [vmem:[%s486 + $0x8] sm:%s479]
                  %491 = vst [vmem:[%s487 + $0x4] sm:%s479] %v490
                  %v492 = vld [vmem:[%s486 + $0x10] sm:%s479]
                  %493 = vst [vmem:[%s487 + $0x8] sm:%s479] %v492
                  %v494 = vld [vmem:[%s486 + $0x18] sm:%s479]
                  %495 = vst [vmem:[%s487 + $0xc] sm:%s479] %v494
                $region95: #{tpu_custom_call.1} parent=82 // loop_footer
                  %s485 = sadd.s32 1, %s481
                $region96: #{tpu_custom_call.1} parent=82 // loop_footer_branch
                  %480 = sbr.rel target = $region92
                $region97: #{tpu_custom_call.1} parent=82 // loop_exit
                  _
              $region83: #{tpu_custom_call.1} parent=67 // pred_fallthru
                _
            $region68: #{tpu_custom_call.1} parent=63 // pred_fallthru
              _
            // Predicated region
            $region69: #{tpu_custom_call.1} parent=63 // pred_check
              _
            $region70: #{tpu_custom_call.1} parent=63 // pred_check_branch
              %449 = sbr.rel (0) target = $region72
            $region71: #{tpu_custom_call.1} parent=63 // pred_region
              %s451 = ssub.s32 16, 1
              loop: start=0, step=1, limit=1
              $region73: #{tpu_custom_call.1} parent=71 // loop_pre_header
                _
              $region74: #{tpu_custom_call.1} parent=71 // loop_header
                %s453 = sphi 0, %s457
                %p454 = scmp.ge.s32.totalorder %s453, 1
                %s458 = sphi %s443, %s443
                %s459 = sphi %s441, %s441
              $region75: #{tpu_custom_call.1} parent=71 // loop_header_branch
                %456 = sbr.rel (%p454) target = $region79
              $region76: #{tpu_custom_call.1} parent=71 // loop_body
                %v460 = vld [vmem:[%s458] sm:%s451]
                %461 = vst [vmem:[%s459] sm:%s451] %v460
                %v462 = vld [vmem:[%s458 + $0x8] sm:%s451]
                %463 = vst [vmem:[%s459 + $0x4] sm:%s451] %v462
                %v464 = vld [vmem:[%s458 + $0x10] sm:%s451]
                %465 = vst [vmem:[%s459 + $0x8] sm:%s451] %v464
                %v466 = vld [vmem:[%s458 + $0x18] sm:%s451]
                %467 = vst [vmem:[%s459 + $0xc] sm:%s451] %v466
              $region77: #{tpu_custom_call.1} parent=71 // loop_footer
                %s457 = sadd.s32 1, %s453
              $region78: #{tpu_custom_call.1} parent=71 // loop_footer_branch
                %452 = sbr.rel target = $region74
              $region79: #{tpu_custom_call.1} parent=71 // loop_exit
                _
            $region72: #{tpu_custom_call.1} parent=63 // pred_fallthru
              _
          $region64: #{tpu_custom_call.1} parent=59 // pred_fallthru
            _
          %496 = vnop
        $region60: #{tpu_custom_call.1} parent=43 // pred_fallthru
          _
      $region44: #{tpu_custom_call.1} parent=5 // pred_fallthru
        _
      %p497 = scmp.le.s32.totalorder 1, %s25
      %p498 = scmp.lt.s32.totalorder %s25, 5
      %p499 = pnand %p497, %p498
      %p500 = pneg %p499
      // Predicated region
      $region98: #{tpu_custom_call.1} parent=5 // pred_check
        _
      $region99: #{tpu_custom_call.1} parent=5 // pred_check_branch
        %502 = sbr.rel (%p499) target = $region101
      $region100: #{tpu_custom_call.1} parent=5 // pred_region
        %s503 = ssub.s32 %s25, 1
        %s504 = sand.u32 %s76, 1
        %s505 = scalar_lea.sflag [#allocation4], %s504
        %s506 = sand.u32 %s76, 1
        %s507 = smul.addr %s506, 32
        %s508 = scalar_lea.vmem [#allocation3], %s507
        // Predicated region
        $region102: #{tpu_custom_call.1} parent=100 // pred_check
          %p509 = pneg %p89
        $region103: #{tpu_custom_call.1} parent=100 // pred_check_branch
          %511 = sbr.rel (%p509) target = $region105
        $region104: #{tpu_custom_call.1} parent=100 // pred_region
          %513 = dma.done %s505, 512
        $region105: #{tpu_custom_call.1} parent=100 // pred_fallthru
          _
        // Predicated region
        $region106: #{tpu_custom_call.1} parent=100 // pred_check
          %p514 = pneg %p178
        $region107: #{tpu_custom_call.1} parent=100 // pred_check_branch
          %516 = sbr.rel (%p514) target = $region109
        $region108: #{tpu_custom_call.1} parent=100 // pred_region
          %518 = dma.done [#allocation7], 256
        $region109: #{tpu_custom_call.1} parent=100 // pred_fallthru
          _
        // Predicated region
        $region110: #{tpu_custom_call.1} parent=100 // pred_check
          %p519 = pneg %p199
        $region111: #{tpu_custom_call.1} parent=100 // pred_check_branch
          %521 = sbr.rel (%p519) target = $region113
        $region112: #{tpu_custom_call.1} parent=100 // pred_region
          %523 = dma.done [#allocation7], 16
        $region113: #{tpu_custom_call.1} parent=100 // pred_fallthru
          _
        // Predicated region
        $region114: #{tpu_custom_call.1} parent=100 // pred_check
          %p524 = pneg %p241
        $region115: #{tpu_custom_call.1} parent=100 // pred_check_branch
          %526 = sbr.rel (%p524) target = $region117
        $region116: #{tpu_custom_call.1} parent=100 // pred_region
          %528 = dma.done [#allocation10], 16
        $region117: #{tpu_custom_call.1} parent=100 // pred_fallthru
          _
        // Predicated region
        $region118: #{tpu_custom_call.1} parent=100 // pred_check
          %p529 = pneg %p262
        $region119: #{tpu_custom_call.1} parent=100 // pred_check_branch
          %531 = sbr.rel (%p529) target = $region121
        $region120: #{tpu_custom_call.1} parent=100 // pred_region
          %533 = dma.done [#allocation10], 256
        $region121: #{tpu_custom_call.1} parent=100 // pred_fallthru
          _
        %s534 = sand.u32 %s275, 1
        %s535 = sand.u32 %s275, 1
        %s536 = smul.addr %s535, 16
        %s537 = scalar_lea.vmem [#allocation12], %s536
        // Predicated region
        $region122: #{tpu_custom_call.1} parent=100 // pred_check
          %p538 = pneg %p288
        $region123: #{tpu_custom_call.1} parent=100 // pred_check_branch
          %540 = sbr.rel (%p538) target = $region125
        $region124: #{tpu_custom_call.1} parent=100 // pred_region
          _
        $region125: #{tpu_custom_call.1} parent=100 // pred_fallthru
          _
        %s541 = smul.u32 2, %s34
        %p542 = scmp.lt.s32.totalorder %s541, 3
        %s543 = scalar_select %p542, %s541, 3
        %s544 = scalar_lea.vmem %s0, %s543
        %p545 = pneg %p63
        %p546 = pneg %p60
        %s547 = sand.u32 %s76, 1
        %s548 = scalar_lea.sflag [#allocation4], %s547
        %s549 = sand.u32 %s76, 1
        %s550 = smul.addr %s549, 32
        %s551 = scalar_lea.vmem [#allocation3], %s550
        %p552 = pneg %p89
        %p553 = pneg %p86
        %s554 = smul.u32 2, %s34
        %p555 = scmp.lt.s32.totalorder %s554, 3
        %s556 = scalar_select %p555, %s554, 3
        %s557 = scalar_lea.vmem %s2, %s556
        %p558 = pneg %p115
        %p559 = pneg %p112
        %p560 = pneg %p136
        %p561 = pneg %p133
        %p562 = pneg %p157
        %p563 = pneg %p154
        %p564 = pneg %p178
        %p565 = pneg %p175
        %p566 = pneg %p199
        %p567 = pneg %p196
        %p568 = pneg %p220
        %p569 = pneg %p217
        %p570 = pneg %p241
        %p571 = pneg %p238
        %p572 = pneg %p262
        %p573 = pneg %p259
        %s574 = sand.u32 %s275, 1
        %s575 = sand.u32 %s275, 1
        %s576 = smul.addr %s575, 16
        %s577 = scalar_lea.vmem [#allocation12], %s576
        %p578 = pneg %p288
        %p579 = pneg %p285
        %p580 = pneg %p316
        %p581 = pneg %p313
        %s582 = sand.u32 %s303, 1
        %s583 = scalar_lea.sflag [#allocation5], %s582
        %s584 = sand.u32 %s303, 1
        %s585 = smul.addr %s584, 16
        %s586 = scalar_lea.vmem [#allocation13], %s585
        %s587 = smul.u32 2, %s34
        %p588 = scmp.lt.s32.totalorder %s587, 3
        %s589 = scalar_select %p588, %s587, 3
        %s590 = scalar_lea.vmem %s0, %s589
        %s591 = smul.u32 2, %s34
        %s592 = smul.u32 2, %s34
        %s593 = smul.u32 2, %s34
        %p594 = scmp.lt.s32.totalorder %s593, 3
        %s595 = scalar_select %p594, %s593, 3
        %s596 = scalar_lea.vmem %s2, %s595
        %s597 = smul.u32 2, %s34
        %s598 = smul.u32 2, %s34
        %p600 = scmp.eq.s32.totalorder %s35, 0
        // Predicated region
        $region126: #{tpu_custom_call.1} parent=100 // pred_check
          %p601 = pneg %p600
        $region127: #{tpu_custom_call.1} parent=100 // pred_check_branch
          %603 = sbr.rel (%p601) target = $region129
        $region128: #{tpu_custom_call.1} parent=100 // pred_region
          %v604 = vld [vmem:[%s590] sm:$0x1]
          %v605 = vld [vmem:[%s590 + $0x1] sm:$0x1]
          %v606 = vpack.c.bf16 %v604, %v604
          %v607 = vpack.c.bf16 %v605, %v605
          %v608 = vld [vmem:[%s3] sm:$0xf]
          %v609 = vld [vmem:[%s3 + $0x4] sm:$0xf]
          %v610 = vld [vmem:[%s3 + $0x8] sm:$0xf]
          %v611 = vld [vmem:[%s3 + $0xc] sm:$0xf]
          %v612 = vld [vmem:[%s4] sm:$0x1]
          %v614 = vperm.slane %v612, 0
          %v618 = vunpack.c.l.b16 %v606
          %v619 = vunpack.c.l.b16 %v607
          %v620 = vrot.slane %v619, 7
          %vm621 = vcmask 1041409
          %v622 = vsel %vm621, %v620, %v618
          %v623 = vpack.c.b16 %v622, %v622
          %v628 = vunpack.c.l.b16 %v608
          %v629 = vunpack.c.l.b16 %v609
          %v630 = vunpack.c.l.b16 %v610
          %v631 = vunpack.c.l.b16 %v611
          %v632 = vpack.c.b16 %v629, %v628
          %v633 = vpack.c.b16 %v631, %v630
          %vm636 = vcmask 261120
          %v638 = vsel %vm636, %v623, 0
          %640 = vmatpush.bf16.msra.mxu0 0
          %641 = vmatpush.bf16.msra.mxu0 0
          %642 = vmatpush.bf16.msra.mxu0 0
          %643 = vmatpush.bf16.msra.mxu0 0
          %644 = vmatpush.bf16.msra.mxu0 0
          %645 = vmatpush.bf16.msra.mxu0 0
          %646 = vmatpush.bf16.msra.mxu0 %v633
          %647 = vmatpush.bf16.msra.mxu0 %v632
          %648 = vmatmul.bf16.gmra.mxu0 %v638
          %v649 = vpop.f32.mrf.mxu0
          %v650 = vadd.f32 %v614, %v649
          %v651 = vpop.f32.mrf.mxu0
          %652 = vdwg.mxu0
          %v653 = vmul.f32 %v650, %v650
          %v654 = vmul.f32 %v650, %v653
          %v655 = vmul.f32 %v654, 0.044715
          %v656 = vadd.f32 %v650, %v655
          %v657 = vmul.f32 %v656, 0.7978846
          %v658 = vtanh.pop %v657
          %v659 = vadd.f32 %v658, 1.0
          %v660 = vmul.f32 %v659, 0.5
          %v661 = vmul.f32 %v650, %v660
          %v662 = vpack.c.bf16 %v661, %v661
          %v663 = vld [vmem:[#allocation6] sm:$0xf]
          %v664 = vld [vmem:[#allocation6 + $0x4] sm:$0xf]
          %v665 = vld [vmem:[#allocation6 + $0x8] sm:$0xf]
          %v666 = vld [vmem:[#allocation6 + $0xc] sm:$0xf]
          %v667 = vld [vmem:[#allocation8] sm:$0x1]
          %v669 = vperm.slane %v667, 0
          %v675 = vunpack.c.l.b16 %v663
          %v676 = vunpack.c.l.b16 %v664
          %v677 = vunpack.c.l.b16 %v665
          %v678 = vunpack.c.l.b16 %v666
          %v679 = vpack.c.b16 %v676, %v675
          %v680 = vpack.c.b16 %v678, %v677
          %v684 = vsel %vm636, %v662, 0
          %686 = vmatpush.bf16.msra.mxu0 0
          %687 = vmatpush.bf16.msra.mxu0 0
          %688 = vmatpush.bf16.msra.mxu0 0
          %689 = vmatpush.bf16.msra.mxu0 0
          %690 = vmatpush.bf16.msra.mxu0 0
          %691 = vmatpush.bf16.msra.mxu0 0
          %692 = vmatpush.bf16.msra.mxu0 %v680
          %693 = vmatpush.bf16.msra.mxu0 %v679
          %694 = vmatmul.bf16.gmra.mxu0 %v684
          %v695 = vpop.f32.mrf.mxu0
          %v696 = vadd.f32 %v669, %v695
          %v697 = vpop.f32.mrf.mxu0
          %698 = vdwg.mxu0
          %v699 = vmul.f32 %v696, %v696
          %v700 = vmul.f32 %v696, %v699
          %v701 = vmul.f32 %v700, 0.044715
          %v702 = vadd.f32 %v696, %v701
          %v703 = vmul.f32 %v702, 0.7978846
          %v704 = vtanh.pop %v703
          %v705 = vadd.f32 %v704, 1.0
          %v706 = vmul.f32 %v705, 0.5
          %v707 = vmul.f32 %v696, %v706
          %v708 = vpack.c.bf16 %v707, %v707
          %v709 = vld [vmem:[%s7] sm:$0xf]
          %v710 = vld [vmem:[%s7 + $0x4] sm:$0xf]
          %v711 = vld [vmem:[%s7 + $0x8] sm:$0xf]
          %v712 = vld [vmem:[%s7 + $0xc] sm:$0xf]
          %v713 = vld [vmem:[%s7 + $0x10] sm:$0xf]
          %v714 = vld [vmem:[%s7 + $0x14] sm:$0xf]
          %v715 = vld [vmem:[%s7 + $0x18] sm:$0xf]
          %v716 = vld [vmem:[%s7 + $0x1c] sm:$0xf]
          %v717 = vld [vmem:[#allocation9] sm:$0x1]
          %v719 = vperm.slane %v717, 0
          %v729 = vunpack.c.l.b16 %v709
          %v730 = vunpack.c.l.b16 %v710
          %v731 = vunpack.c.l.b16 %v711
          %v732 = vunpack.c.l.b16 %v712
          %v733 = vunpack.c.l.b16 %v713
          %v734 = vunpack.c.l.b16 %v714
          %v735 = vunpack.c.l.b16 %v715
          %v736 = vunpack.c.l.b16 %v716
          %v737 = vpack.c.b16 %v730, %v729
          %v738 = vpack.c.b16 %v732, %v731
          %v739 = vpack.c.b16 %v734, %v733
          %v740 = vpack.c.b16 %v736, %v735
          %vm745 = vcmask 523264
          %v747 = vsel %vm745, %v708, 0
          %749 = vmatpush.bf16.msra.mxu0 0
          %750 = vmatpush.bf16.msra.mxu0 0
          %751 = vmatpush.bf16.msra.mxu0 0
          %752 = vmatpush.bf16.msra.mxu0 0
          %753 = vmatpush.bf16.msra.mxu0 %v740
          %754 = vmatpush.bf16.msra.mxu0 %v739
          %755 = vmatpush.bf16.msra.mxu0 %v738
          %756 = vmatpush.bf16.msra.mxu0 %v737
          %757 = vmatmul.bf16.gmra.mxu0 %v747
          %v758 = vpop.f32.mrf.mxu0
          %v759 = vadd.f32 %v719, %v758
          %v760 = vpop.f32.mrf.mxu0
          %761 = vdwg.mxu0
          %v762 = vld [vmem:[%s508] sm:$0xff]
          %v763 = vld [vmem:[%s508 + $0x8] sm:$0xff]
          %v764 = vld [vmem:[%s508 + $0x10] sm:$0xff]
          %v765 = vld [vmem:[%s508 + $0x18] sm:$0xff]
          %v766 = vlaneseq
          %v767 = vshrl.u32 %v766, 7
          %v768 = vadd.s32 %v767, 8
          %vm769 = vcmp.eq.s32.totalorder %v767, 0
          %vm770 = vcmp.eq.s32.totalorder %v768, 0
          %v772 = vrot.slane %v759, 1
          %v773 = vsel %vm769, 1, 0
          %v774 = vsel %vm770, 1, 0
          %vm775 = vcmp.eq.s32.totalorder %v773, 1
          %vm776 = vcmp.eq.s32.totalorder %v774, 1
          %v777 = vperm.slane %v759, 0
          %v778 = vperm.slane %v772, 0
          %v781 = vsel %vm775, %v777, %v762
          %v782 = vsel %vm776, %v777, %v763
          %v783 = vsel %vm775, %v778, %v764
          %v784 = vsel %vm776, %v778, %v765
          %v785 = vpack.c.bf16 %v782, %v781
          %v786 = vpack.c.bf16 %v784, %v783
          %v787 = vld [vmem:[#allocation11] sm:$0xf]
          %v788 = vld [vmem:[#allocation11 + $0x4] sm:$0xf]
          %v789 = vld [vmem:[#allocation11 + $0x8] sm:$0xf]
          %v790 = vld [vmem:[#allocation11 + $0xc] sm:$0xf]
          %v795 = vunpack.c.l.b16 %v787
          %v796 = vunpack.c.l.b16 %v788
          %v797 = vunpack.c.l.b16 %v789
          %v798 = vunpack.c.l.b16 %v790
          %v799 = vpack.c.b16 %v796, %v795
          %v800 = vpack.c.b16 %v798, %v797
          %v804 = vsel %vm636, %v785, 0
          %v807 = vsel %vm636, %v786, 0
          %809 = vmatpush.bf16.msra.mxu0 0
          %810 = vmatpush.bf16.msra.mxu0 0
          %811 = vmatpush.bf16.msra.mxu0 0
          %812 = vmatpush.bf16.msra.mxu0 0
          %813 = vmatpush.bf16.msra.mxu0 0
          %814 = vmatpush.bf16.msra.mxu0 0
          %815 = vmatpush.bf16.msra.mxu0 %v800
          %816 = vmatpush.bf16.msra.mxu0 %v799
          %817 = vmatmul.bf16.gmra.mxu0 %v804
          %v818 = vpop.f32.mrf.mxu0
          %v819 = vadd.f32 0.0, %v818
          %v820 = vpop.f32.mrf.mxu0
          %v821 = vadd.f32 0.0, %v820
          %822 = vmatmul.bf16.gmra.mxu0 %v807
          %v823 = vpop.f32.mrf.mxu0
          %v824 = vadd.f32 0.0, %v823
          %v825 = vpop.f32.mrf.mxu0
          %v826 = vadd.f32 0.0, %v825
          %827 = vdwg.mxu0
          %v828 = vpack.c.bf16 %v819, %v819
          %v829 = vpack.c.bf16 %v821, %v821
          %v830 = vpack.c.bf16 %v824, %v824
          %v831 = vpack.c.bf16 %v826, %v826
          %v832 = vlaneseq
          %v833 = vand.u32 %v832, 127
          %vm834 = vcmp.le.s32.totalorder %v833, %v767
          %vm835 = vcmp.le.s32.totalorder %v833, %v768
          %v836 = vsel %vm834, 0.0, -1e+30
          %v837 = vsel %vm835, 0.0, -1e+30
          %v840 = vunpack.c.l.b16 %v828
          %v841 = vunpack.c.l.b16 %v829
          %v842 = vpack.c.b16 %v841, %v840
          %843 = vrot.lane.b32.xlu0 %v842, 96
          %v844 = vpop.permute.xlu0 %843
          %v846 = vsel %vm636, %v842, 0
          %v849 = vsel %vm636, %v844, 0
          %851 = vmatpush.bf16.xpose.msra.mxu0 0
          %852 = vmatpush.bf16.xpose.msra.mxu0 0
          %853 = vmatpush.bf16.xpose.msra.mxu0 0
          %854 = vmatpush.bf16.xpose.msra.mxu0 0
          %855 = vmatpush.bf16.xpose.msra.mxu0 0
          %856 = vmatpush.bf16.xpose.msra.mxu0 0
          %857 = vmatpush.bf16.xpose.msra.mxu0 0
          %858 = vmatpush.bf16.xpose.msra.mxu0 %v849
          %859 = vmatmul.bf16.gmra.mxu0 %v846
          %v860 = vpop.f32.mrf.mxu0
          %v861 = vadd.f32 %v836, %v860
          %v862 = vpop.f32.mrf.mxu0
          %v863 = vadd.f32 %v837, %v862
          %864 = vdwg.mxu0
          %v867 = vunpack.c.l.b16 %v830
          %v868 = vunpack.c.l.b16 %v831
          %v869 = vpack.c.b16 %v868, %v867
          %870 = vrot.lane.b32.xlu0 %v869, 96
          %v871 = vpop.permute.xlu0 %870
          %v873 = vsel %vm636, %v869, 0
          %v876 = vsel %vm636, %v871, 0
          %878 = vmatpush.bf16.xpose.msra.mxu0 0
          %879 = vmatpush.bf16.xpose.msra.mxu0 0
          %880 = vmatpush.bf16.xpose.msra.mxu0 0
          %881 = vmatpush.bf16.xpose.msra.mxu0 0
          %882 = vmatpush.bf16.xpose.msra.mxu0 0
          %883 = vmatpush.bf16.xpose.msra.mxu0 0
          %884 = vmatpush.bf16.xpose.msra.mxu0 0
          %885 = vmatpush.bf16.xpose.msra.mxu0 %v876
          %886 = vmatmul.bf16.gmra.mxu0 %v873
          %v887 = vpop.f32.mrf.mxu0
          %v888 = vadd.f32 %v836, %v887
          %v889 = vpop.f32.mrf.mxu0
          %v890 = vadd.f32 %v837, %v889
          %891 = vdwg.mxu0
          %v892 = vld [vmem:[%s596] sm:$0x1]
          %v893 = vld [vmem:[%s596 + $0x1] sm:$0x1]
          %v896 = vperm.slane %v892, 0
          %v897 = vperm.slane %v893, 0
          %v900 = vadd.f32 %v861, %v896
          %v901 = vadd.f32 %v863, %v896
          %v902 = vadd.f32 %v888, %v897
          %v903 = vadd.f32 %v890, %v897
          %vm904 = vcmask 130048
          %v905 = vsel %vm904, %v900, -inf
          %906 = vmax.xlane.f32.xlu0 %v905
          %v907 = vpop.xlane.xlu0 %906
          %v908 = vsel %vm904, %v901, -inf
          %909 = vmax.xlane.f32.xlu0 %v908
          %v910 = vpop.xlane.xlu0 %909
          %v911 = vsel %vm904, %v902, -inf
          %912 = vmax.xlane.f32.xlu0 %v911
          %v913 = vpop.xlane.xlu0 %912
          %v914 = vsel %vm904, %v903, -inf
          %915 = vmax.xlane.f32.xlu0 %v914
          %v916 = vpop.xlane.xlu0 %915
          %v917 = vsub.f32 %v900, %v907
          %v918 = vsub.f32 %v901, %v910
          %v919 = vsub.f32 %v902, %v913
          %v920 = vsub.f32 %v903, %v916
          %v921 = vmul.f32 %v917, 1.442695
          %v922 = vpow.pop %v921
          %v923 = vmul.f32 %v918, 1.442695
          %v924 = vpow.pop %v923
          %v925 = vmul.f32 %v919, 1.442695
          %v926 = vpow.pop %v925
          %v927 = vmul.f32 %v920, 1.442695
          %v928 = vpow.pop %v927
          %v929 = vsel %vm904, %v922, 0.0
          %930 = vadd.xlane.f32.xlu0 %v929
          %v931 = vpop.xlane.xlu0 %930
          %v932 = vsel %vm904, %v924, 0.0
          %933 = vadd.xlane.f32.xlu0 %v932
          %v934 = vpop.xlane.xlu0 %933
          %v935 = vsel %vm904, %v926, 0.0
          %936 = vadd.xlane.f32.xlu0 %v935
          %v937 = vpop.xlane.xlu0 %936
          %v938 = vsel %vm904, %v928, 0.0
          %939 = vadd.xlane.f32.xlu0 %v938
          %v940 = vpop.xlane.xlu0 %939
          %v941 = vrcp.pop %v931
          %v942 = vrcp.pop %v934
          %v943 = vrcp.pop %v937
          %v944 = vrcp.pop %v940
          %v945 = vmul.f32 %v922, %v941
          %v946 = vmul.f32 %v924, %v942
          %v947 = vmul.f32 %v926, %v943
          %v948 = vmul.f32 %v928, %v944
          %v949 = vpack.c.bf16 %v945, %v945
          %v950 = vpack.c.bf16 %v946, %v946
          %v951 = vpack.c.bf16 %v947, %v947
          %v952 = vpack.c.bf16 %v948, %v948
          %v955 = vunpack.c.l.b16 %v949
          %v956 = vunpack.c.l.b16 %v950
          %v957 = vpack.c.b16 %v956, %v955
          %958 = vrot.lane.b32.xlu0 %v842, 64
          %v959 = vpop.permute.xlu0 %958
          %v962 = vsel %vm904, %v957, 0
          %964 = vmatpush.bf16.msra.mxu0 0
          %965 = vmatpush.bf16.msra.mxu0 0
          %966 = vmatpush.bf16.msra.mxu0 0
          %967 = vmatpush.bf16.msra.mxu0 0
          %968 = vmatpush.bf16.msra.mxu0 0
          %969 = vmatpush.bf16.msra.mxu0 0
          %970 = vmatpush.bf16.msra.mxu0 0
          %971 = vmatpush.bf16.msra.mxu0 %v959
          %972 = vmatmul.bf16.gmra.mxu0 %v962
          %v973 = vpop.f32.mrf.mxu0
          %v974 = vadd.f32 0.0, %v973
          %v975 = vpop.f32.mrf.mxu0
          %v976 = vadd.f32 0.0, %v975
          %977 = vdwg.mxu0
          %v980 = vunpack.c.l.b16 %v951
          %v981 = vunpack.c.l.b16 %v952
          %v982 = vpack.c.b16 %v981, %v980
          %983 = vrot.lane.b32.xlu0 %v869, 64
          %v984 = vpop.permute.xlu0 %983
          %v987 = vsel %vm904, %v982, 0
          %989 = vmatpush.bf16.msra.mxu0 0
          %990 = vmatpush.bf16.msra.mxu0 0
          %991 = vmatpush.bf16.msra.mxu0 0
          %992 = vmatpush.bf16.msra.mxu0 0
          %993 = vmatpush.bf16.msra.mxu0 0
          %994 = vmatpush.bf16.msra.mxu0 0
          %995 = vmatpush.bf16.msra.mxu0 0
          %996 = vmatpush.bf16.msra.mxu0 %v984
          %997 = vmatmul.bf16.gmra.mxu0 %v987
          %v998 = vpop.f32.mrf.mxu0
          %v999 = vadd.f32 0.0, %v998
          %v1000 = vpop.f32.mrf.mxu0
          %v1001 = vadd.f32 0.0, %v1000
          %1002 = vdwg.mxu0
          %v1003 = vadd.f32 %v781, %v974
          %v1004 = vadd.f32 %v782, %v976
          %v1005 = vadd.f32 %v783, %v999
          %v1006 = vadd.f32 %v784, %v1001
          %vm1011 = vcmask 1046528
          %v1012 = vrot.slane %v1003, 1
          %v1013 = vrot.slane %v1004, 1
          %v1014 = vsel %vm1011, %v1012, %v1013
          %v1015 = vrot.slane %v1005, 1
          %v1016 = vrot.slane %v1006, 1
          %v1017 = vsel %vm1011, %v1015, %v1016
          %v1020 = vpack.c.bf16 %v1014, %v1014
          %v1021 = vpack.c.bf16 %v1017, %v1017
          %vm1022 = vcmask 257024
          %1023 = vst.msk [vmem:[#allocation2] sm:$0xf] %vm1022, %v1020
          %1024 = vst.msk [vmem:[#allocation2 + $0x4] sm:$0xf] %vm1022, %v1021
        $region129: #{tpu_custom_call.1} parent=100 // pred_fallthru
          _
        %v1025 = vld [vmem:[#allocation2] sm:$0xf]
        %v1026 = vld [vmem:[#allocation2 + $0x4] sm:$0xf]
        %v1027 = vld [vmem:[%s537] sm:$0xf]
        %v1028 = vld [vmem:[%s537 + $0x4] sm:$0xf]
        %v1029 = vld [vmem:[%s537 + $0x8] sm:$0xf]
        %v1030 = vld [vmem:[%s537 + $0xc] sm:$0xf]
        %v1033 = vunpack.c.l.b16 %v1025
        %v1034 = vunpack.c.l.b16 %v1026
        %v1035 = vpack.c.b16 %v1034, %v1033
        %v1040 = vunpack.c.l.b16 %v1027
        %v1041 = vunpack.c.l.b16 %v1028
        %v1042 = vunpack.c.l.b16 %v1029
        %v1043 = vunpack.c.l.b16 %v1030
        %v1044 = vpack.c.b16 %v1041, %v1040
        %v1045 = vpack.c.b16 %v1043, %v1042
        %vm1048 = vcmask 261120
        %v1050 = vsel %vm1048, %v1035, 0
        %1052 = vmatpush.bf16.msra.mxu0 0
        %1053 = vmatpush.bf16.msra.mxu0 0
        %1054 = vmatpush.bf16.msra.mxu0 0
        %1055 = vmatpush.bf16.msra.mxu0 0
        %1056 = vmatpush.bf16.msra.mxu0 0
        %1057 = vmatpush.bf16.msra.mxu0 0
        %1058 = vmatpush.bf16.msra.mxu0 %v1045
        %1059 = vmatpush.bf16.msra.mxu0 %v1044
        %1060 = vmatmul.bf16.gmra.mxu0 %v1050
        %v1061 = vpop.f32.mrf.mxu0
        %v1062 = vadd.f32 0.0, %v1061
        %v1063 = vpop.f32.mrf.mxu0
        %v1064 = vadd.f32 0.0, %v1063
        %1065 = vdwg.mxu0
        %1066 = vst [vmem:[%s586] sm:$0xff] %v1062
        %1067 = vst [vmem:[%s586 + $0x8] sm:$0xff] %v1064
        %s1068 = sand.u32 %s303, 1
        %s1069 = scalar_lea.sflag [#allocation5], %s1068
        %s1070 = sand.u32 %s303, 1
        %s1071 = smul.addr %s1070, 16
        %s1072 = scalar_lea.vmem [#allocation13], %s1071
        // Predicated region
        $region130: #{tpu_custom_call.1} parent=100 // pred_check
          %p1073 = pneg %p313
        $region131: #{tpu_custom_call.1} parent=100 // pred_check_branch
          %1075 = sbr.rel (%p1073) target = $region133
        $region132: #{tpu_custom_call.1} parent=100 // pred_region
          %s1076 = smul.u32 2, %s34
          %1078 = vsyncadd %s1069, 0
          %s1079 = smul.addr %s1076, 2
          %s1080 = sadd.s32 %s35, %s1079
          %s1081 = smul.addr %s1080, 8
          %s1082 = scalar_lea.hbm %s11, %s1081
          %s1083 = sshll.u32 %s1072, 4
          %s1084 = int_to_ptr.vmem [resolvable:$true] %s1083
          %s1085 = sshll.u32 %s1082, 4
          %s1086 = int_to_ptr.hbm [resolvable:$true] %s1085
          %1091 = dma.vmem_to_hbm [thread:$0]  %s1084, 256, %s1086, %s1069, 128, 256, 8
        $region133: #{tpu_custom_call.1} parent=100 // pred_fallthru
          _
      $region101: #{tpu_custom_call.1} parent=5 // pred_fallthru
        _
      %p1092 = scmp.le.s32.totalorder 2, %s25
      // Predicated region
      $region134: #{tpu_custom_call.1} parent=5 // pred_check
        %p1093 = pneg %p1092
      $region135: #{tpu_custom_call.1} parent=5 // pred_check_branch
        %1095 = sbr.rel (%p1093) target = $region137
      $region136: #{tpu_custom_call.1} parent=5 // pred_region
        %s1096 = ssub.s32 %s25, 2
        // Predicated region
        $region138: #{tpu_custom_call.1} parent=136 // pred_check
          %p1097 = pneg %p319
        $region139: #{tpu_custom_call.1} parent=136 // pred_check_branch
          %1099 = sbr.rel (%p1097) target = $region141
        $region140: #{tpu_custom_call.1} parent=136 // pred_region
          %s1100 = sand.u32 %s304, 1
          %s1101 = scalar_lea.sflag [#allocation5], %s1100
          %s1102 = sand.u32 %s304, 1
          %s1103 = smul.addr %s1102, 16
          %s1104 = scalar_lea.vmem [#allocation13], %s1103
          %1106 = dma.done %s1101, 256
        $region141: #{tpu_custom_call.1} parent=136 // pred_fallthru
          _
      $region137: #{tpu_custom_call.1} parent=5 // pred_fallthru
        _
    $region6: #{tpu_custom_call.1} parent=1 // loop_footer
      %s29 = sadd.s32 1, %s25
    $region7: #{tpu_custom_call.1} parent=1 // loop_footer_branch
      %24 = sbr.rel target = $region3
    $region8: #{tpu_custom_call.1} parent=1 // loop_exit
      _
    %1107 = vsyncpa [#allocation4], 1
    %s1108 = scalar_lea.sflag [#allocation4], 1
    %1109 = vsyncpa %s1108, 1
    %1110 = vsyncpa [#allocation7], 1
    %1111 = vsyncpa [#allocation10], 1
    %1112 = vsyncpa [#allocation5], 1
    %s1113 = scalar_lea.sflag [#allocation5], 1
    %1114 = vsyncpa %s1113, 1

// kernel: tpu_custom_call.1
$region0: #{tpu_custom_call.1}
  #allocation0 [shape = 'u32[]', space=smem, size = 0x4, offset = 0x4, fixed_abs, tag = 'smem constant byte address 0x4 - core index']
  #allocation1 [shape = 'u32[72,128]{1,0:T(1,128)}', space=vmem, size = 0x9000, scoped, tag = 'internal scratch']
  #allocation2 [shape = 'bf16[16,32]{1,0:T(8,128)(2,1)}', space=vmem, size = 0x1000, scoped, tag = 'scratch operand']
  %s0 = inlined_call_operand.vmem [shape: f32[4,1,32], index: 0, kind: input, shape index: {}]
  %s1 = inlined_call_operand.hbm [shape: f32[4,16,32], index: 1, kind: input, shape index: {}]
  %s2 = inlined_call_operand.vmem [shape: f32[4,1,16], index: 2, kind: input, shape index: {}]
  %s3 = inlined_call_operand.vmem [shape: bf16[32,32], index: 3, kind: input, shape index: {}]
  %s4 = inlined_call_operand.vmem [shape: f32[1,32], index: 4, kind: input, shape index: {}]
  %s5 = inlined_call_operand.hbm [shape: bf16[32,64], index: 5, kind: input, shape index: {}]
  %s6 = inlined_call_operand.hbm [shape: f32[1,64], index: 6, kind: input, shape index: {}]
  %s7 = inlined_call_operand.vmem [shape: bf16[64,32], index: 7, kind: input, shape index: {}]
  %s8 = inlined_call_operand.hbm [shape: f32[1,32], index: 8, kind: input, shape index: {}]
  %s9 = inlined_call_operand.hbm [shape: bf16[32,96], index: 9, kind: input, shape index: {}]
  %s10 = inlined_call_operand.vmem [shape: bf16[32,256], index: 10, kind: input, shape index: {}]
  %s11 = inlined_call_operand.hbm [shape: f32[4,8,256], index: 11, kind: output, shape index: {}]
  %s12 = sld [smem:[#allocation0]]
  $region142: #{tpu_custom_call.1} parent=0
    _
  %s14 = ssub.s32 1, %s12
  %s15 = scalar_select 0, %s14, %s12
  $region1: #{tpu_custom_call.1} parent=0
    #allocation3 [shape = 'u8[32768]{0}', space=vmem, size = 0x8000, scoped, tag = 'input window, operand 1']
    #allocation4 [shape = 's32[2]{0}', space=sflag, size = 0x8, scoped, tag = 'scoped memory for tpu_custom_call.1']
    #allocation5 [shape = 's32[2]{0}', space=sflag, size = 0x8, scoped, tag = 'scoped memory for tpu_custom_call.1']
    #allocation6 [shape = 'u8[8192]{0}', space=vmem, size = 0x2000, scoped, tag = 'input window, operand 5, single buffered']
    #allocation7 [shape = 's32[1]{0}', space=sflag, size = 0x4, scoped, tag = 'scoped memory for tpu_custom_call.1']
    #allocation8 [shape = 'u8[512]{0}', space=vmem, size = 0x400, scoped, tag = 'input window, operand 6, single buffered']
    #allocation9 [shape = 'u8[512]{0}', space=vmem, size = 0x400, scoped, tag = 'input window, operand 8, single buffered']
    #allocation10 [shape = 's32[1]{0}', space=sflag, size = 0x4, scoped, tag = 'scoped memory for tpu_custom_call.1']
    #allocation11 [shape = 'u8[8192]{0}', space=vmem, size = 0x2000, scoped, tag = 'input window, operand 9, single buffered']
    #allocation12 [shape = 'u8[16384]{0}', space=vmem, size = 0x4000, scoped, tag = 'input window, operand 10']
    #allocation13 [shape = 'u8[16384]{0}', space=vmem, size = 0x4000, scoped, tag = 'output window, operand 0']
    %16 = vsyncpa [#allocation4], 0
    %s17 = scalar_lea.sflag [#allocation4], 1
    %18 = vsyncpa %s17, 0
    %19 = vsyncpa [#allocation7], 0
    %20 = vsyncpa [#allocation10], 0
    %21 = vsyncpa [#allocation5], 0
    %s22 = scalar_lea.sflag [#allocation5], 1
    %23 = vsyncpa %s22, 0
    loop: start=0, step=1, limit=6
    $region2: #{tpu_custom_call.1} parent=1 // loop_pre_header
      _
    $region3: #{tpu_custom_call.1} parent=1 // loop_header
      %s25 = sphi 0, %s29
      %p26 = scmp.ge.s32.totalorder %s25, 6
      %s32 = sphi 0, %s44
      %s33 = sphi 0, %s40
      %s34 = sphi 0, %s32
      %s35 = sphi 0, %s33
      %s36 = sphi 0, %s34
      %s37 = sphi 0, %s35
      %s47 = sphi 0, %s49
      %s50 = sphi 0, %s47
      %s51 = sphi 0, %s50
      %s67 = sphi 0, %s51
      %s73 = sphi 0, %s75
      %s76 = sphi 0, %s73
      %s77 = sphi 0, %s76
      %s93 = sphi 0, %s77
      %s99 = sphi 0, %s101
      %s102 = sphi 0, %s99
      %s103 = sphi 0, %s102
      %s119 = sphi 0, %s103
      %s123 = sphi 0, %s123
      %s125 = sphi 0, %s123
      %s126 = sphi 0, %s125
      %s140 = sphi 0, %s126
      %s144 = sphi 0, %s144
      %s146 = sphi 0, %s144
      %s147 = sphi 0, %s146
      %s161 = sphi 0, %s147
      %s165 = sphi 0, %s165
      %s167 = sphi 0, %s165
      %s168 = sphi 0, %s167
      %s182 = sphi 0, %s168
      %s186 = sphi 0, %s186
      %s188 = sphi 0, %s186
      %s189 = sphi 0, %s188
      %s203 = sphi 0, %s189
      %s207 = sphi 0, %s207
      %s209 = sphi 0, %s207
      %s210 = sphi 0, %s209
      %s224 = sphi 0, %s210
      %s228 = sphi 0, %s228
      %s230 = sphi 0, %s228
      %s231 = sphi 0, %s230
      %s245 = sphi 0, %s231
      %s249 = sphi 0, %s249
      %s251 = sphi 0, %s249
      %s252 = sphi 0, %s251
      %s266 = sphi 0, %s252
      %s272 = sphi 0, %s274
      %s275 = sphi 0, %s272
      %s276 = sphi 0, %s275
      %s292 = sphi 0, %s276
      %s300 = sphi 0, %s302
      %s303 = sphi 0, %s300
      %s304 = sphi 0, %s303
      %s320 = sphi 0, %s304
    $region4: #{tpu_custom_call.1} parent=1 // loop_header_branch
      %28 = sbr.rel (%p26) target = $region8
    $region5: #{tpu_custom_call.1} parent=1 // loop_body
      %s30 = ssub.s32 %s25, 1
      %s31 = ssub.s32 %s25, 2
      %s38 = sadd.s32 1, %s33
      %p39 = scmp.ge.s32.totalorder %s38, 2
      %s40 = scalar_select %p39, 0, %s38
      %s41 = sadd.s32 1, %s32
      %s42 = scalar_select %p39, %s41, %s32
      %p43 = scmp.ge.s32.totalorder %s42, 2
      %s44 = scalar_select %p43, 0, %s42
      %s45 = ssub.s32 %s32, %s44
      %p46 = scmp.eq.s32.totalorder %s45, 0
      %s48 = sadd.s32 %s47, 1
      %s49 = scalar_select %p46, %s47, %s48
      %p52 = pneg %p46
      %p53 = scmp.eq.s32.totalorder %s25, 3
      %p54 = por %p52, %p53
      %p55 = scmp.ne.s32.totalorder %s47, %s50
      %p56 = scmp.eq.s32.totalorder %s25, 0
      %p57 = por %p55, %p56
      %p58 = scmp.ne.s32.totalorder %s47, %s50
      %p59 = scmp.eq.s32.totalorder %s30, 3
      %p60 = por %p58, %p59
      %p61 = scmp.ne.s32.totalorder %s50, %s51
      %p62 = scmp.eq.s32.totalorder %s30, 0
      %p63 = por %p61, %p62
      %p64 = scmp.ne.s32.totalorder %s50, %s51
      %p65 = scmp.eq.s32.totalorder %s31, 3
      %p66 = por %p64, %p65
      %p68 = scmp.ne.s32.totalorder %s51, %s67
      %p69 = scmp.eq.s32.totalorder %s31, 0
      %p70 = por %p68, %p69
      %s71 = ssub.s32 %s32, %s44
      %p72 = scmp.eq.s32.totalorder %s71, 0
      %s74 = sadd.s32 %s73, 1
      %s75 = scalar_select %p72, %s73, %s74
      %p78 = pneg %p72
      %p79 = scmp.eq.s32.totalorder %s25, 3
      %p80 = por %p78, %p79
      %p81 = scmp.ne.s32.totalorder %s73, %s76
      %p82 = scmp.eq.s32.totalorder %s25, 0
      %p83 = por %p81, %p82
      %p84 = scmp.ne.s32.totalorder %s73, %s76
      %p85 = scmp.eq.s32.totalorder %s30, 3
      %p86 = por %p84, %p85
      %p87 = scmp.ne.s32.totalorder %s76, %s77
      %p88 = scmp.eq.s32.totalorder %s30, 0
      %p89 = por %p87, %p88
      %p90 = scmp.ne.s32.totalorder %s76, %s77
      %p91 = scmp.eq.s32.totalorder %s31, 3
      %p92 = por %p90, %p91
      %p94 = scmp.ne.s32.totalorder %s77, %s93
      %p95 = scmp.eq.s32.totalorder %s31, 0
      %p96 = por %p94, %p95
      %s97 = ssub.s32 %s32, %s44
      %p98 = scmp.eq.s32.totalorder %s97, 0
      %s100 = sadd.s32 %s99, 1
      %s101 = scalar_select %p98, %s99, %s100
      %p104 = pneg %p98
      %p105 = scmp.eq.s32.totalorder %s25, 3
      %p106 = por %p104, %p105
      %p107 = scmp.ne.s32.totalorder %s99, %s102
      %p108 = scmp.eq.s32.totalorder %s25, 0
      %p109 = por %p107, %p108
      %p110 = scmp.ne.s32.totalorder %s99, %s102
      %p111 = scmp.eq.s32.totalorder %s30, 3
      %p112 = por %p110, %p111
      %p113 = scmp.ne.s32.totalorder %s102, %s103
      %p114 = scmp.eq.s32.totalorder %s30, 0
      %p115 = por %p113, %p114
      %p116 = scmp.ne.s32.totalorder %s102, %s103
      %p117 = scmp.eq.s32.totalorder %s31, 3
      %p118 = por %p116, %p117
      %p120 = scmp.ne.s32.totalorder %s103, %s119
      %p121 = scmp.eq.s32.totalorder %s31, 0
      %p122 = por %p120, %p121
      %s124 = sadd.s32 %s123, 1
      %p127 = scmp.eq.s32.totalorder %s25, 3
      %p128 = scmp.ne.s32.totalorder %s123, %s125
      %p129 = scmp.eq.s32.totalorder %s25, 0
      %p130 = por %p128, %p129
      %p131 = scmp.ne.s32.totalorder %s123, %s125
      %p132 = scmp.eq.s32.totalorder %s30, 3
      %p133 = por %p131, %p132
      %p134 = scmp.ne.s32.totalorder %s125, %s126
      %p135 = scmp.eq.s32.totalorder %s30, 0
      %p136 = por %p134, %p135
      %p137 = scmp.ne.s32.totalorder %s125, %s126
      %p138 = scmp.eq.s32.totalorder %s31, 3
      %p139 = por %p137, %p138
      %p141 = scmp.ne.s32.totalorder %s126, %s140
      %p142 = scmp.eq.s32.totalorder %s31, 0
      %p143 = por %p141, %p142
      %s145 = sadd.s32 %s144, 1
      %p148 = scmp.eq.s32.totalorder %s25, 3
      %p149 = scmp.ne.s32.totalorder %s144, %s146
      %p150 = scmp.eq.s32.totalorder %s25, 0
      %p151 = por %p149, %p150
      %p152 = scmp.ne.s32.totalorder %s144, %s146
      %p153 = scmp.eq.s32.totalorder %s30, 3
      %p154 = por %p152, %p153
      %p155 = scmp.ne.s32.totalorder %s146, %s147
      %p156 = scmp.eq.s32.totalorder %s30, 0
      %p157 = por %p155, %p156
      %p158 = scmp.ne.s32.totalorder %s146, %s147
      %p159 = scmp.eq.s32.totalorder %s31, 3
      %p160 = por %p158, %p159
      %p162 = scmp.ne.s32.totalorder %s147, %s161
      %p163 = scmp.eq.s32.totalorder %s31, 0
      %p164 = por %p162, %p163
      %s166 = sadd.s32 %s165, 1
      %p169 = scmp.eq.s32.totalorder %s25, 3
      %p170 = scmp.ne.s32.totalorder %s165, %s167
      %p171 = scmp.eq.s32.totalorder %s25, 0
      %p172 = por %p170, %p171
      %p173 = scmp.ne.s32.totalorder %s165, %s167
      %p174 = scmp.eq.s32.totalorder %s30, 3
      %p175 = por %p173, %p174
      %p176 = scmp.ne.s32.totalorder %s167, %s168
      %p177 = scmp.eq.s32.totalorder %s30, 0
      %p178 = por %p176, %p177
      %p179 = scmp.ne.s32.totalorder %s167, %s168
      %p180 = scmp.eq.s32.totalorder %s31, 3
      %p181 = por %p179, %p180
      %p183 = scmp.ne.s32.totalorder %s168, %s182
      %p184 = scmp.eq.s32.totalorder %s31, 0
      %p185 = por %p183, %p184
      %s187 = sadd.s32 %s186, 1
      %p190 = scmp.eq.s32.totalorder %s25, 3
      %p191 = scmp.ne.s32.totalorder %s186, %s188
      %p192 = scmp.eq.s32.totalorder %s25, 0
      %p193 = por %p191, %p192
      %p194 = scmp.ne.s32.totalorder %s186, %s188
      %p195 = scmp.eq.s32.totalorder %s30, 3
      %p196 = por %p194, %p195
      %p197 = scmp.ne.s32.totalorder %s188, %s189
      %p198 = scmp.eq.s32.totalorder %s30, 0
      %p199 = por %p197, %p198
      %p200 = scmp.ne.s32.totalorder %s188, %s189
      %p201 = scmp.eq.s32.totalorder %s31, 3
      %p202 = por %p200, %p201
      %p204 = scmp.ne.s32.totalorder %s189, %s203
      %p205 = scmp.eq.s32.totalorder %s31, 0
      %p206 = por %p204, %p205
      %s208 = sadd.s32 %s207, 1
      %p211 = scmp.eq.s32.totalorder %s25, 3
      %p212 = scmp.ne.s32.totalorder %s207, %s209
      %p213 = scmp.eq.s32.totalorder %s25, 0
      %p214 = por %p212, %p213
      %p215 = scmp.ne.s32.totalorder %s207, %s209
      %p216 = scmp.eq.s32.totalorder %s30, 3
      %p217 = por %p215, %p216
      %p218 = scmp.ne.s32.totalorder %s209, %s210
      %p219 = scmp.eq.s32.totalorder %s30, 0
      %p220 = por %p218, %p219
      %p221 = scmp.ne.s32.totalorder %s209, %s210
      %p222 = scmp.eq.s32.totalorder %s31, 3
      %p223 = por %p221, %p222
      %p225 = scmp.ne.s32.totalorder %s210, %s224
      %p226 = scmp.eq.s32.totalorder %s31, 0
      %p227 = por %p225, %p226
      %s229 = sadd.s32 %s228, 1
      %p232 = scmp.eq.s32.totalorder %s25, 3
      %p233 = scmp.ne.s32.totalorder %s228, %s230
      %p234 = scmp.eq.s32.totalorder %s25, 0
      %p235 = por %p233, %p234
      %p236 = scmp.ne.s32.totalorder %s228, %s230
      %p237 = scmp.eq.s32.totalorder %s30, 3
      %p238 = por %p236, %p237
      %p239 = scmp.ne.s32.totalorder %s230, %s231
      %p240 = scmp.eq.s32.totalorder %s30, 0
      %p241 = por %p239, %p240
      %p242 = scmp.ne.s32.totalorder %s230, %s231
      %p243 = scmp.eq.s32.totalorder %s31, 3
      %p244 = por %p242, %p243
      %p246 = scmp.ne.s32.totalorder %s231, %s245
      %p247 = scmp.eq.s32.totalorder %s31, 0
      %p248 = por %p246, %p247
      %s250 = sadd.s32 %s249, 1
      %p253 = scmp.eq.s32.totalorder %s25, 3
      %p254 = scmp.ne.s32.totalorder %s249, %s251
      %p255 = scmp.eq.s32.totalorder %s25, 0
      %p256 = por %p254, %p255
      %p257 = scmp.ne.s32.totalorder %s249, %s251
      %p258 = scmp.eq.s32.totalorder %s30, 3
      %p259 = por %p257, %p258
      %p260 = scmp.ne.s32.totalorder %s251, %s252
      %p261 = scmp.eq.s32.totalorder %s30, 0
      %p262 = por %p260, %p261
      %p263 = scmp.ne.s32.totalorder %s251, %s252
      %p264 = scmp.eq.s32.totalorder %s31, 3
      %p265 = por %p263, %p264
      %p267 = scmp.ne.s32.totalorder %s252, %s266
      %p268 = scmp.eq.s32.totalorder %s31, 0
      %p269 = por %p267, %p268
      %s270 = ssub.s32 %s33, %s40
      %p271 = scmp.eq.s32.totalorder %s270, 0
      %s273 = sadd.s32 %s272, 1
      %s274 = scalar_select %p271, %s272, %s273
      %p277 = pneg %p271
      %p278 = scmp.eq.s32.totalorder %s25, 3
      %p279 = por %p277, %p278
      %p280 = scmp.ne.s32.totalorder %s272, %s275
      %p281 = scmp.eq.s32.totalorder %s25, 0
      %p282 = por %p280, %p281
      %p283 = scmp.ne.s32.totalorder %s272, %s275
      %p284 = scmp.eq.s32.totalorder %s30, 3
      %p285 = por %p283, %p284
      %p286 = scmp.ne.s32.totalorder %s275, %s276
      %p287 = scmp.eq.s32.totalorder %s30, 0
      %p288 = por %p286, %p287
      %p289 = scmp.ne.s32.totalorder %s275, %s276
      %p290 = scmp.eq.s32.totalorder %s31, 3
      %p291 = por %p289, %p290
      %p293 = scmp.ne.s32.totalorder %s276, %s292
      %p294 = scmp.eq.s32.totalorder %s31, 0
      %p295 = por %p293, %p294
      %s296 = ssub.s32 %s32, %s44
      %s297 = ssub.s32 %s33, %s40
      %s298 = sor.u32 %s296, %s297
      %p299 = scmp.eq.s32.totalorder %s298, 0
      %s301 = sadd.s32 %s300, 1
      %s302 = scalar_select %p299, %s300, %s301
      %p305 = pneg %p299
      %p306 = scmp.eq.s32.totalorder %s25, 3
      %p307 = por %p305, %p306
      %p308 = scmp.ne.s32.totalorder %s300, %s303
      %p309 = scmp.eq.s32.totalorder %s25, 0
      %p310 = por %p308, %p309
      %p311 = scmp.ne.s32.totalorder %s300, %s303
      %p312 = scmp.eq.s32.totalorder %s30, 3
      %p313 = por %p311, %p312
      %p314 = scmp.ne.s32.totalorder %s303, %s304
      %p315 = scmp.eq.s32.totalorder %s30, 0
      %p316 = por %p314, %p315
      %p317 = scmp.ne.s32.totalorder %s303, %s304
      %p318 = scmp.eq.s32.totalorder %s31, 3
      %p319 = por %p317, %p318
      %p321 = scmp.ne.s32.totalorder %s304, %s320
      %p322 = scmp.eq.s32.totalorder %s31, 0
      %p323 = por %p321, %p322
      %p324 = scmp.le.s32.totalorder 1, %s25
      %p325 = scmp.lt.s32.totalorder %s25, 5
      %p326 = pnand %p324, %p325
      %p327 = pneg %p326
      // Predicated region
      $region9: #{tpu_custom_call.1} parent=5 // pred_check
        _
      $region10: #{tpu_custom_call.1} parent=5 // pred_check_branch
        %329 = sbr.rel (%p326) target = $region12
      $region11: #{tpu_custom_call.1} parent=5 // pred_region
        %s330 = ssub.s32 %s25, 1
        // Predicated region
        $region13: #{tpu_custom_call.1} parent=11 // pred_check
          %p331 = pneg %p136
        $region14: #{tpu_custom_call.1} parent=11 // pred_check_branch
          %333 = sbr.rel (%p331) target = $region16
        $region15: #{tpu_custom_call.1} parent=11 // pred_region
          _
        $region16: #{tpu_custom_call.1} parent=11 // pred_fallthru
          _
        // Predicated region
        $region17: #{tpu_custom_call.1} parent=11 // pred_check
          %p334 = pneg %p157
        $region18: #{tpu_custom_call.1} parent=11 // pred_check_branch
          %336 = sbr.rel (%p334) target = $region20
        $region19: #{tpu_custom_call.1} parent=11 // pred_region
          _
        $region20: #{tpu_custom_call.1} parent=11 // pred_fallthru
          _
        // Predicated region
        $region21: #{tpu_custom_call.1} parent=11 // pred_check
          %p337 = pneg %p178
        $region22: #{tpu_custom_call.1} parent=11 // pred_check_branch
          %339 = sbr.rel (%p337) target = $region24
        $region23: #{tpu_custom_call.1} parent=11 // pred_region
          %341 = vsyncadd [#allocation7], 0
          %s342 = sshll.u32 %s5, 4
          %s343 = int_to_ptr.hbm [resolvable:$true] %s342
          %s344 = sshll.u32 [#allocation6], 4
          %s345 = int_to_ptr.vmem [resolvable:$true] %s344
          %350 = dma.hbm_to_vmem [thread:$0]  %s343, 256, %s345, [#allocation7], 64, 64, 4
        $region24: #{tpu_custom_call.1} parent=11 // pred_fallthru
          _
        // Predicated region
        $region25: #{tpu_custom_call.1} parent=11 // pred_check
          %p351 = pneg %p199
        $region26: #{tpu_custom_call.1} parent=11 // pred_check_branch
          %353 = sbr.rel (%p351) target = $region28
        $region27: #{tpu_custom_call.1} parent=11 // pred_region
          %355 = vsyncadd [#allocation7], 0
          %s357 = sshll.u32 %s6, 4
          %s358 = int_to_ptr.hbm [resolvable:$true] %s357
          %s359 = sshll.u32 [#allocation8], 4
          %s360 = int_to_ptr.vmem [resolvable:$true] %s359
          %362 = dma.hbm_to_vmem [thread:$0]  %s358, 16, %s360, [#allocation7]
        $region28: #{tpu_custom_call.1} parent=11 // pred_fallthru
          _
        // Predicated region
        $region29: #{tpu_custom_call.1} parent=11 // pred_check
          %p363 = pneg %p220
        $region30: #{tpu_custom_call.1} parent=11 // pred_check_branch
          %365 = sbr.rel (%p363) target = $region32
        $region31: #{tpu_custom_call.1} parent=11 // pred_region
          _
        $region32: #{tpu_custom_call.1} parent=11 // pred_fallthru
          _
        // Predicated region
        $region33: #{tpu_custom_call.1} parent=11 // pred_check
          %p366 = pneg %p241
        $region34: #{tpu_custom_call.1} parent=11 // pred_check_branch
          %368 = sbr.rel (%p366) target = $region36
        $region35: #{tpu_custom_call.1} parent=11 // pred_region
          %370 = vsyncadd [#allocation10], 0
          %s372 = sshll.u32 %s8, 4
          %s373 = int_to_ptr.hbm [resolvable:$true] %s372
          %s374 = sshll.u32 [#allocation9], 4
          %s375 = int_to_ptr.vmem [resolvable:$true] %s374
          %377 = dma.hbm_to_vmem [thread:$0]  %s373, 16, %s375, [#allocation10]
        $region36: #{tpu_custom_call.1} parent=11 // pred_fallthru
          _
        // Predicated region
        $region37: #{tpu_custom_call.1} parent=11 // pred_check
          %p378 = pneg %p262
        $region38: #{tpu_custom_call.1} parent=11 // pred_check_branch
          %380 = sbr.rel (%p378) target = $region40
        $region39: #{tpu_custom_call.1} parent=11 // pred_region
          %382 = vsyncadd [#allocation10], 0
          %s383 = sshll.u32 %s9, 4
          %s384 = int_to_ptr.hbm [resolvable:$true] %s383
          %s385 = sshll.u32 [#allocation11], 4
          %s386 = int_to_ptr.vmem [resolvable:$true] %s385
          %391 = dma.hbm_to_vmem [thread:$0]  %s384, 256, %s386, [#allocation10], 64, 64, 4
        $region40: #{tpu_custom_call.1} parent=11 // pred_fallthru
          _
      $region12: #{tpu_custom_call.1} parent=5 // pred_fallthru
        _
      %p392 = scmp.lt.s32.totalorder %s25, 4
      // Predicated region
      $region41: #{tpu_custom_call.1} parent=5 // pred_check
        %p393 = pneg %p392
      $region42: #{tpu_custom_call.1} parent=5 // pred_check_branch
        %395 = sbr.rel (%p393) target = $region44
      $region43: #{tpu_custom_call.1} parent=5 // pred_region
        // Predicated region
        $region45: #{tpu_custom_call.1} parent=43 // pred_check
          %p396 = pneg %p57
        $region46: #{tpu_custom_call.1} parent=43 // pred_check_branch
          %398 = sbr.rel (%p396) target = $region48
        $region47: #{tpu_custom_call.1} parent=43 // pred_region
          %s399 = smul.u32 2, %s32
          %p400 = scmp.lt.s32.totalorder %s399, 3
          %s401 = scalar_select %p400, %s399, 3
          %s402 = scalar_lea.vmem %s0, %s401
          %s403 = smul.u32 2, %s32
        $region48: #{tpu_custom_call.1} parent=43 // pred_fallthru
          _
        // Predicated region
        $region49: #{tpu_custom_call.1} parent=43 // pred_check
          %p404 = pneg %p83
        $region50: #{tpu_custom_call.1} parent=43 // pred_check_branch
          %406 = sbr.rel (%p404) target = $region52
        $region51: #{tpu_custom_call.1} parent=43 // pred_region
          %s407 = sand.u32 %s73, 1
          %s408 = scalar_lea.sflag [#allocation4], %s407
          %s409 = sand.u32 %s73, 1
          %s410 = smul.addr %s409, 32
          %s411 = scalar_lea.vmem [#allocation3], %s410
          %s412 = smul.u32 2, %s32
          %414 = vsyncadd %s408, 0
          %s415 = smul.addr %s412, 2
          %s416 = smul.addr %s415, 8
          %s417 = scalar_lea.hbm %s1, %s416
          %s418 = sshll.u32 %s417, 4
          %s419 = int_to_ptr.hbm [resolvable:$true] %s418
          %s420 = sshll.u32 %s411, 4
          %s421 = int_to_ptr.vmem [resolvable:$true] %s420
          %426 = dma.hbm_to_vmem [thread:$0]  %s419, 512, %s421, %s408, 128, 128, 8
        $region52: #{tpu_custom_call.1} parent=43 // pred_fallthru
          _
        // Predicated region
        $region53: #{tpu_custom_call.1} parent=43 // pred_check
          %p427 = pneg %p109
        $region54: #{tpu_custom_call.1} parent=43 // pred_check_branch
          %429 = sbr.rel (%p427) target = $region56
        $region55: #{tpu_custom_call.1} parent=43 // pred_region
          %s430 = smul.u32 2, %s32
          %p431 = scmp.lt.s32.totalorder %s430, 3
          %s432 = scalar_select %p431, %s430, 3
          %s433 = scalar_lea.vmem %s2, %s432
          %s434 = smul.u32 2, %s32
        $region56: #{tpu_custom_call.1} parent=43 // pred_fallthru
          _
        // Predicated region
        $region57: #{tpu_custom_call.1} parent=43 // pred_check
          %p435 = pneg %p282
        $region58: #{tpu_custom_call.1} parent=43 // pred_check_branch
          %437 = sbr.rel (%p435) target = $region60
        $region59: #{tpu_custom_call.1} parent=43 // pred_region
          %s438 = sand.u32 %s272, 1
          %s439 = sand.u32 %s272, 1
          %s440 = smul.addr %s439, 16
          %s441 = scalar_lea.vmem [#allocation12], %s440
          %s442 = smul.addr %s33, 4
          %s443 = scalar_lea.vmem %s10, %s442
          // Predicated region
          $region61: #{tpu_custom_call.1} parent=59 // pred_check
            _
          $region62: #{tpu_custom_call.1} parent=59 // pred_check_branch
            %445 = sbr.rel (0) target = $region64
          $region63: #{tpu_custom_call.1} parent=59 // pred_region
            // Predicated region
            $region65: #{tpu_custom_call.1} parent=63 // pred_check
              _
            $region66: #{tpu_custom_call.1} parent=63 // pred_check_branch
              %447 = sbr.rel target = $region68
            $region67: #{tpu_custom_call.1} parent=63 // pred_region
              // Predicated region
              $region80: #{tpu_custom_call.1} parent=67 // pred_check
                _
              $region81: #{tpu_custom_call.1} parent=67 // pred_check_branch
                %469 = sbr.rel (0) target = $region83
              $region82: #{tpu_custom_call.1} parent=67 // pred_region
                loop: start=0, step=1, limit=1
                $region84: #{tpu_custom_call.1} parent=82 // loop_pre_header
                  _
                $region85: #{tpu_custom_call.1} parent=82 // loop_header
                  %s471 = sphi 0, %s475
                  %p472 = scmp.ge.s32.totalorder %s471, 1
                  %s476 = sphi %s443, %s443
                  %s477 = sphi %s441, %s441
                $region86: #{tpu_custom_call.1} parent=82 // loop_header_branch
                  %474 = sbr.rel (%p472) target = $region90
                $region87: #{tpu_custom_call.1} parent=82 // loop_body
                  _
                $region88: #{tpu_custom_call.1} parent=82 // loop_footer
                  %s475 = sadd.s32 1, %s471
                $region89: #{tpu_custom_call.1} parent=82 // loop_footer_branch
                  %470 = sbr.rel target = $region85
                $region90: #{tpu_custom_call.1} parent=82 // loop_exit
                  _
                %s479 = ssub.s32 16, 1
                loop: start=0, step=1, limit=1
                $region91: #{tpu_custom_call.1} parent=82 // loop_pre_header
                  _
                $region92: #{tpu_custom_call.1} parent=82 // loop_header
                  %s481 = sphi 0, %s485
                  %p482 = scmp.ge.s32.totalorder %s481, 1
                  %s486 = sphi %s443, %s443
                  %s487 = sphi %s441, %s441
                $region93: #{tpu_custom_call.1} parent=82 // loop_header_branch
                  %484 = sbr.rel (%p482) target = $region97
                $region94: #{tpu_custom_call.1} parent=82 // loop_body
                  %v488 = vld [vmem:[%s486] sm:%s479]
                  %489 = vst [vmem:[%s487] sm:%s479] %v488
                  %v490 = vld [vmem:[%s486 + $0x8] sm:%s479]
                  %491 = vst [vmem:[%s487 + $0x4] sm:%s479] %v490
                  %v492 = vld [vmem:[%s486 + $0x10] sm:%s479]
                  %493 = vst [vmem:[%s487 + $0x8] sm:%s479] %v492
                  %v494 = vld [vmem:[%s486 + $0x18] sm:%s479]
                  %495 = vst [vmem:[%s487 + $0xc] sm:%s479] %v494
                $region95: #{tpu_custom_call.1} parent=82 // loop_footer
                  %s485 = sadd.s32 1, %s481
                $region96: #{tpu_custom_call.1} parent=82 // loop_footer_branch
                  %480 = sbr.rel target = $region92
                $region97: #{tpu_custom_call.1} parent=82 // loop_exit
                  _
              $region83: #{tpu_custom_call.1} parent=67 // pred_fallthru
                _
            $region68: #{tpu_custom_call.1} parent=63 // pred_fallthru
              _
            // Predicated region
            $region69: #{tpu_custom_call.1} parent=63 // pred_check
              _
            $region70: #{tpu_custom_call.1} parent=63 // pred_check_branch
              %449 = sbr.rel (0) target = $region72
            $region71: #{tpu_custom_call.1} parent=63 // pred_region
              %s451 = ssub.s32 16, 1
              loop: start=0, step=1, limit=1
              $region73: #{tpu_custom_call.1} parent=71 // loop_pre_header
                _
              $region74: #{tpu_custom_call.1} parent=71 // loop_header
                %s453 = sphi 0, %s457
                %p454 = scmp.ge.s32.totalorder %s453, 1
                %s458 = sphi %s443, %s443
                %s459 = sphi %s441, %s441
              $region75: #{tpu_custom_call.1} parent=71 // loop_header_branch
                %456 = sbr.rel (%p454) target = $region79
              $region76: #{tpu_custom_call.1} parent=71 // loop_body
                %v460 = vld [vmem:[%s458] sm:%s451]
                %461 = vst [vmem:[%s459] sm:%s451] %v460
                %v462 = vld [vmem:[%s458 + $0x8] sm:%s451]
                %463 = vst [vmem:[%s459 + $0x4] sm:%s451] %v462
                %v464 = vld [vmem:[%s458 + $0x10] sm:%s451]
                %465 = vst [vmem:[%s459 + $0x8] sm:%s451] %v464
                %v466 = vld [vmem:[%s458 + $0x18] sm:%s451]
                %467 = vst [vmem:[%s459 + $0xc] sm:%s451] %v466
              $region77: #{tpu_custom_call.1} parent=71 // loop_footer
                %s457 = sadd.s32 1, %s453
              $region78: #{tpu_custom_call.1} parent=71 // loop_footer_branch
                %452 = sbr.rel target = $region74
              $region79: #{tpu_custom_call.1} parent=71 // loop_exit
                _
            $region72: #{tpu_custom_call.1} parent=63 // pred_fallthru
              _
          $region64: #{tpu_custom_call.1} parent=59 // pred_fallthru
            _
          %496 = vnop
        $region60: #{tpu_custom_call.1} parent=43 // pred_fallthru
          _
      $region44: #{tpu_custom_call.1} parent=5 // pred_fallthru
        _
      %p497 = scmp.le.s32.totalorder 1, %s25
      %p498 = scmp.lt.s32.totalorder %s25, 5
      %p499 = pnand %p497, %p498
      %p500 = pneg %p499
      // Predicated region
      $region98: #{tpu_custom_call.1} parent=5 // pred_check
        _
      $region99: #{tpu_custom_call.1} parent=5 // pred_check_branch
        %502 = sbr.rel (%p499) target = $region101
      $region100: #{tpu_custom_call.1} parent=5 // pred_region
        %s503 = ssub.s32 %s25, 1
        %s504 = sand.u32 %s76, 1
        %s505 = scalar_lea.sflag [#allocation4], %s504
        %s506 = sand.u32 %s76, 1
        %s507 = smul.addr %s506, 32
        %s508 = scalar_lea.vmem [#allocation3], %s507
        // Predicated region
        $region102: #{tpu_custom_call.1} parent=100 // pred_check
          %p509 = pneg %p89
        $region103: #{tpu_custom_call.1} parent=100 // pred_check_branch
          %511 = sbr.rel (%p509) target = $region105
        $region104: #{tpu_custom_call.1} parent=100 // pred_region
          %513 = dma.done %s505, 512
        $region105: #{tpu_custom_call.1} parent=100 // pred_fallthru
          _
        // Predicated region
        $region106: #{tpu_custom_call.1} parent=100 // pred_check
          %p514 = pneg %p178
        $region107: #{tpu_custom_call.1} parent=100 // pred_check_branch
          %516 = sbr.rel (%p514) target = $region109
        $region108: #{tpu_custom_call.1} parent=100 // pred_region
          %518 = dma.done [#allocation7], 256
        $region109: #{tpu_custom_call.1} parent=100 // pred_fallthru
          _
        // Predicated region
        $region110: #{tpu_custom_call.1} parent=100 // pred_check
          %p519 = pneg %p199
        $region111: #{tpu_custom_call.1} parent=100 // pred_check_branch
          %521 = sbr.rel (%p519) target = $region113
        $region112: #{tpu_custom_call.1} parent=100 // pred_region
          %523 = dma.done [#allocation7], 16
        $region113: #{tpu_custom_call.1} parent=100 // pred_fallthru
          _
        // Predicated region
        $region114: #{tpu_custom_call.1} parent=100 // pred_check
          %p524 = pneg %p241
        $region115: #{tpu_custom_call.1} parent=100 // pred_check_branch
          %526 = sbr.rel (%p524) target = $region117
        $region116: #{tpu_custom_call.1} parent=100 // pred_region
          %528 = dma.done [#allocation10], 16
        $region117: #{tpu_custom_call.1} parent=100 // pred_fallthru
          _
        // Predicated region
        $region118: #{tpu_custom_call.1} parent=100 // pred_check
          %p529 = pneg %p262
        $region119: #{tpu_custom_call.1} parent=100 // pred_check_branch
          %531 = sbr.rel (%p529) target = $region121
        $region120: #{tpu_custom_call.1} parent=100 // pred_region
          %533 = dma.done [#allocation10], 256
        $region121: #{tpu_custom_call.1} parent=100 // pred_fallthru
          _
        %s534 = sand.u32 %s275, 1
        %s535 = sand.u32 %s275, 1
        %s536 = smul.addr %s535, 16
        %s537 = scalar_lea.vmem [#allocation12], %s536
        // Predicated region
        $region122: #{tpu_custom_call.1} parent=100 // pred_check
          %p538 = pneg %p288
        $region123: #{tpu_custom_call.1} parent=100 // pred_check_branch
          %540 = sbr.rel (%p538) target = $region125
        $region124: #{tpu_custom_call.1} parent=100 // pred_region
          _
        $region125: #{tpu_custom_call.1} parent=100 // pred_fallthru
          _
        %s541 = smul.u32 2, %s34
        %p542 = scmp.lt.s32.totalorder %s541, 3
        %s543 = scalar_select %p542, %s541, 3
        %s544 = scalar_lea.vmem %s0, %s543
        %p545 = pneg %p63
        %p546 = pneg %p60
        %s547 = sand.u32 %s76, 1
        %s548 = scalar_lea.sflag [#allocation4], %s547
        %s549 = sand.u32 %s76, 1
        %s550 = smul.addr %s549, 32
        %s551 = scalar_lea.vmem [#allocation3], %s550
        %p552 = pneg %p89
        %p553 = pneg %p86
        %s554 = smul.u32 2, %s34
        %p555 = scmp.lt.s32.totalorder %s554, 3
        %s556 = scalar_select %p555, %s554, 3
        %s557 = scalar_lea.vmem %s2, %s556
        %p558 = pneg %p115
        %p559 = pneg %p112
        %p560 = pneg %p136
        %p561 = pneg %p133
        %p562 = pneg %p157
        %p563 = pneg %p154
        %p564 = pneg %p178
        %p565 = pneg %p175
        %p566 = pneg %p199
        %p567 = pneg %p196
        %p568 = pneg %p220
        %p569 = pneg %p217
        %p570 = pneg %p241
        %p571 = pneg %p238
        %p572 = pneg %p262
        %p573 = pneg %p259
        %s574 = sand.u32 %s275, 1
        %s575 = sand.u32 %s275, 1
        %s576 = smul.addr %s575, 16
        %s577 = scalar_lea.vmem [#allocation12], %s576
        %p578 = pneg %p288
        %p579 = pneg %p285
        %p580 = pneg %p316
        %p581 = pneg %p313
        %s582 = sand.u32 %s303, 1
        %s583 = scalar_lea.sflag [#allocation5], %s582
        %s584 = sand.u32 %s303, 1
        %s585 = smul.addr %s584, 16
        %s586 = scalar_lea.vmem [#allocation13], %s585
        %s587 = smul.u32 2, %s34
        %p588 = scmp.lt.s32.totalorder %s587, 3
        %s589 = scalar_select %p588, %s587, 3
        %s590 = scalar_lea.vmem %s0, %s589
        %s591 = smul.u32 2, %s34
        %s592 = smul.u32 2, %s34
        %s593 = smul.u32 2, %s34
        %p594 = scmp.lt.s32.totalorder %s593, 3
        %s595 = scalar_select %p594, %s593, 3
        %s596 = scalar_lea.vmem %s2, %s595
        %s597 = smul.u32 2, %s34
        %s598 = smul.u32 2, %s34
        %p600 = scmp.eq.s32.totalorder %s35, 0
        // Predicated region
        $region126: #{tpu_custom_call.1} parent=100 // pred_check
          %p601 = pneg %p600
        $region127: #{tpu_custom_call.1} parent=100 // pred_check_branch
          %603 = sbr.rel (%p601) target = $region129
        $region128: #{tpu_custom_call.1} parent=100 // pred_region
          %v604 = vld [vmem:[%s590] sm:$0x1]
          %v605 = vld [vmem:[%s590 + $0x1] sm:$0x1]
          %v606 = vpack.c.bf16 %v604, %v604
          %v607 = vpack.c.bf16 %v605, %v605
          %v608 = vld [vmem:[%s3] sm:$0xf]
          %v609 = vld [vmem:[%s3 + $0x4] sm:$0xf]
          %v610 = vld [vmem:[%s3 + $0x8] sm:$0xf]
          %v611 = vld [vmem:[%s3 + $0xc] sm:$0xf]
          %v612 = vld [vmem:[%s4] sm:$0x1]
          %v614 = vperm.slane %v612, 0
          %v618 = vunpack.c.l.b16 %v606
          %v619 = vunpack.c.l.b16 %v607
          %v620 = vrot.slane %v619, 7
          %vm621 = vcmask 1041409
          %v622 = vsel %vm621, %v620, %v618
          %v623 = vpack.c.b16 %v622, %v622
          %v628 = vunpack.c.l.b16 %v608
          %v629 = vunpack.c.l.b16 %v609
          %v630 = vunpack.c.l.b16 %v610
          %v631 = vunpack.c.l.b16 %v611
          %v632 = vpack.c.b16 %v629, %v628
          %v633 = vpack.c.b16 %v631, %v630
          %vm636 = vcmask 261120
          %v638 = vsel %vm636, %v623, 0
          %640 = vmatpush.bf16.msra.mxu0 0
          %641 = vmatpush.bf16.msra.mxu0 0
          %642 = vmatpush.bf16.msra.mxu0 0
          %643 = vmatpush.bf16.msra.mxu0 0
          %644 = vmatpush.bf16.msra.mxu0 0
          %645 = vmatpush.bf16.msra.mxu0 0
          %646 = vmatpush.bf16.msra.mxu0 %v633
          %647 = vmatpush.bf16.msra.mxu0 %v632
          %648 = vmatmul.bf16.gmra.mxu0 %v638
          %v649 = vpop.f32.mrf.mxu0
          %v650 = vadd.f32 %v614, %v649
          %v651 = vpop.f32.mrf.mxu0
          %652 = vdwg.mxu0
          %v653 = vmul.f32 %v650, %v650
          %v654 = vmul.f32 %v650, %v653
          %v655 = vmul.f32 %v654, 0.044715
          %v656 = vadd.f32 %v650, %v655
          %v657 = vmul.f32 %v656, 0.7978846
          %v658 = vtanh.pop %v657
          %v659 = vadd.f32 %v658, 1.0
          %v660 = vmul.f32 %v659, 0.5
          %v661 = vmul.f32 %v650, %v660
          %v662 = vpack.c.bf16 %v661, %v661
          %v663 = vld [vmem:[#allocation6] sm:$0xf]
          %v664 = vld [vmem:[#allocation6 + $0x4] sm:$0xf]
          %v665 = vld [vmem:[#allocation6 + $0x8] sm:$0xf]
          %v666 = vld [vmem:[#allocation6 + $0xc] sm:$0xf]
          %v667 = vld [vmem:[#allocation8] sm:$0x1]
          %v669 = vperm.slane %v667, 0
          %v675 = vunpack.c.l.b16 %v663
          %v676 = vunpack.c.l.b16 %v664
          %v677 = vunpack.c.l.b16 %v665
          %v678 = vunpack.c.l.b16 %v666
          %v679 = vpack.c.b16 %v676, %v675
          %v680 = vpack.c.b16 %v678, %v677
          %v684 = vsel %vm636, %v662, 0
          %686 = vmatpush.bf16.msra.mxu0 0
          %687 = vmatpush.bf16.msra.mxu0 0
          %688 = vmatpush.bf16.msra.mxu0 0
          %689 = vmatpush.bf16.msra.mxu0 0
          %690 = vmatpush.bf16.msra.mxu0 0
          %691 = vmatpush.bf16.msra.mxu0 0
          %692 = vmatpush.bf16.msra.mxu0 %v680
          %693 = vmatpush.bf16.msra.mxu0 %v679
          %694 = vmatmul.bf16.gmra.mxu0 %v684
          %v695 = vpop.f32.mrf.mxu0
          %v696 = vadd.f32 %v669, %v695
          %v697 = vpop.f32.mrf.mxu0
          %698 = vdwg.mxu0
          %v699 = vmul.f32 %v696, %v696
          %v700 = vmul.f32 %v696, %v699
          %v701 = vmul.f32 %v700, 0.044715
          %v702 = vadd.f32 %v696, %v701
          %v703 = vmul.f32 %v702, 0.7978846
          %v704 = vtanh.pop %v703
          %v705 = vadd.f32 %v704, 1.0
          %v706 = vmul.f32 %v705, 0.5
          %v707 = vmul.f32 %v696, %v706
          %v708 = vpack.c.bf16 %v707, %v707
          %v709 = vld [vmem:[%s7] sm:$0xf]
          %v710 = vld [vmem:[%s7 + $0x4] sm:$0xf]
          %v711 = vld [vmem:[%s7 + $0x8] sm:$0xf]
          %v712 = vld [vmem:[%s7 + $0xc] sm:$0xf]
          %v713 = vld [vmem:[%s7 + $0x10] sm:$0xf]
          %v714 = vld [vmem:[%s7 + $0x14] sm:$0xf]
          %v715 = vld [vmem:[%s7 + $0x18] sm:$0xf]
          %v716 = vld [vmem:[%s7 + $0x1c] sm:$0xf]
          %v717 = vld [vmem:[#allocation9] sm:$0x1]
          %v719 = vperm.slane %v717, 0
          %v729 = vunpack.c.l.b16 %v709
          %v730 = vunpack.c.l.b16 %v710
          %v731 = vunpack.c.l.b16 %v711
          %v732 = vunpack.c.l.b16 %v712
          %v733 = vunpack.c.l.b16 %v713
          %v734 = vunpack.c.l.b16 %v714
          %v735 = vunpack.c.l.b16 %v715
          %v736 = vunpack.c.l.b16 %v716
          %v737 = vpack.c.b16 %v730, %v729
          %v738 = vpack.c.b16 %v732, %v731
          %v739 = vpack.c.b16 %v734, %v733
          %v740 = vpack.c.b16 %v736, %v735
          %vm745 = vcmask 523264
          %v747 = vsel %vm745, %v708, 0
          %749 = vmatpush.bf16.msra.mxu0 0
          %750 = vmatpush.bf16.msra.mxu0 0
          %751 = vmatpush.bf16.msra.mxu0 0
          %752 = vmatpush.bf16.msra.mxu0 0
          %753 = vmatpush.bf16.msra.mxu0 %v740
          %754 = vmatpush.bf16.msra.mxu0 %v739
          %755 = vmatpush.bf16.msra.mxu0 %v738
          %756 = vmatpush.bf16.msra.mxu0 %v737
          %757 = vmatmul.bf16.gmra.mxu0 %v747
          %v758 = vpop.f32.mrf.mxu0
          %v759 = vadd.f32 %v719, %v758
          %v760 = vpop.f32.mrf.mxu0
          %761 = vdwg.mxu0
          %v762 = vld [vmem:[%s508] sm:$0xff]
          %v763 = vld [vmem:[%s508 + $0x8] sm:$0xff]
          %v764 = vld [vmem:[%s508 + $0x10] sm:$0xff]
          %v765 = vld [vmem:[%s508 + $0x18] sm:$0xff]
          %v766 = vlaneseq
          %v767 = vshrl.u32 %v766, 7
          %v768 = vadd.s32 %v767, 8
          %vm769 = vcmp.eq.s32.totalorder %v767, 0
          %vm770 = vcmp.eq.s32.totalorder %v768, 0
          %v772 = vrot.slane %v759, 1
          %v773 = vsel %vm769, 1, 0
          %v774 = vsel %vm770, 1, 0
          %vm775 = vcmp.eq.s32.totalorder %v773, 1
          %vm776 = vcmp.eq.s32.totalorder %v774, 1
          %v777 = vperm.slane %v759, 0
          %v778 = vperm.slane %v772, 0
          %v781 = vsel %vm775, %v777, %v762
          %v782 = vsel %vm776, %v777, %v763
          %v783 = vsel %vm775, %v778, %v764
          %v784 = vsel %vm776, %v778, %v765
          %v785 = vpack.c.bf16 %v782, %v781
          %v786 = vpack.c.bf16 %v784, %v783
          %v787 = vld [vmem:[#allocation11] sm:$0xf]
          %v788 = vld [vmem:[#allocation11 + $0x4] sm:$0xf]
          %v789 = vld [vmem:[#allocation11 + $0x8] sm:$0xf]
          %v790 = vld [vmem:[#allocation11 + $0xc] sm:$0xf]
          %v795 = vunpack.c.l.b16 %v787
          %v796 = vunpack.c.l.b16 %v788
          %v797 = vunpack.c.l.b16 %v789
          %v798 = vunpack.c.l.b16 %v790
          %v799 = vpack.c.b16 %v796, %v795
          %v800 = vpack.c.b16 %v798, %v797
          %v804 = vsel %vm636, %v785, 0
          %v807 = vsel %vm636, %v786, 0
          %809 = vmatpush.bf16.msra.mxu0 0
          %810 = vmatpush.bf16.msra.mxu0 0
          %811 = vmatpush.bf16.msra.mxu0 0
          %812 = vmatpush.bf16.msra.mxu0 0
          %813 = vmatpush.bf16.msra.mxu0 0
          %814 = vmatpush.bf16.msra.mxu0 0
          %815 = vmatpush.bf16.msra.mxu0 %v800
          %816 = vmatpush.bf16.msra.mxu0 %v799
          %817 = vmatmul.bf16.gmra.mxu0 %v804
          %v818 = vpop.f32.mrf.mxu0
          %v819 = vadd.f32 0.0, %v818
          %v820 = vpop.f32.mrf.mxu0
          %v821 = vadd.f32 0.0, %v820
          %822 = vmatmul.bf16.gmra.mxu0 %v807
          %v823 = vpop.f32.mrf.mxu0
          %v824 = vadd.f32 0.0, %v823
          %v825 = vpop.f32.mrf.mxu0
          %v826 = vadd.f32 0.0, %v825
          %827 = vdwg.mxu0
          %v828 = vpack.c.bf16 %v819, %v819
          %v829 = vpack.c.bf16 %v821, %v821
          %v830 = vpack.c.bf16 %v824, %v824
          %v831 = vpack.c.bf16 %v826, %v826
          %v832 = vlaneseq
          %v833 = vand.u32 %v832, 127
          %vm834 = vcmp.le.s32.totalorder %v833, %v767
          %vm835 = vcmp.le.s32.totalorder %v833, %v768
          %v836 = vsel %vm834, 0.0, -1e+30
          %v837 = vsel %vm835, 0.0, -1e+30
          %v840 = vunpack.c.l.b16 %v828
          %v841 = vunpack.c.l.b16 %v829
          %v842 = vpack.c.b16 %v841, %v840
          %843 = vrot.lane.b32.xlu0 %v842, 96
          %v844 = vpop.permute.xlu0 %843
          %v846 = vsel %vm636, %v842, 0
          %v849 = vsel %vm636, %v844, 0
          %851 = vmatpush.bf16.xpose.msra.mxu0 0
          %852 = vmatpush.bf16.xpose.msra.mxu0 0
          %853 = vmatpush.bf16.xpose.msra.mxu0 0
          %854 = vmatpush.bf16.xpose.msra.mxu0 0
          %855 = vmatpush.bf16.xpose.msra.mxu0 0
          %856 = vmatpush.bf16.xpose.msra.mxu0 0
          %857 = vmatpush.bf16.xpose.msra.mxu0 0
          %858 = vmatpush.bf16.xpose.msra.mxu0 %v849
          %859 = vmatmul.bf16.gmra.mxu0 %v846
          %v860 = vpop.f32.mrf.mxu0
          %v861 = vadd.f32 %v836, %v860
          %v862 = vpop.f32.mrf.mxu0
          %v863 = vadd.f32 %v837, %v862
          %864 = vdwg.mxu0
          %v867 = vunpack.c.l.b16 %v830
          %v868 = vunpack.c.l.b16 %v831
          %v869 = vpack.c.b16 %v868, %v867
          %870 = vrot.lane.b32.xlu0 %v869, 96
          %v871 = vpop.permute.xlu0 %870
          %v873 = vsel %vm636, %v869, 0
          %v876 = vsel %vm636, %v871, 0
          %878 = vmatpush.bf16.xpose.msra.mxu0 0
          %879 = vmatpush.bf16.xpose.msra.mxu0 0
          %880 = vmatpush.bf16.xpose.msra.mxu0 0
          %881 = vmatpush.bf16.xpose.msra.mxu0 0
          %882 = vmatpush.bf16.xpose.msra.mxu0 0
          %883 = vmatpush.bf16.xpose.msra.mxu0 0
          %884 = vmatpush.bf16.xpose.msra.mxu0 0
          %885 = vmatpush.bf16.xpose.msra.mxu0 %v876
          %886 = vmatmul.bf16.gmra.mxu0 %v873
          %v887 = vpop.f32.mrf.mxu0
          %v888 = vadd.f32 %v836, %v887
          %v889 = vpop.f32.mrf.mxu0
          %v890 = vadd.f32 %v837, %v889
          %891 = vdwg.mxu0
          %v892 = vld [vmem:[%s596] sm:$0x1]
          %v893 = vld [vmem:[%s596 + $0x1] sm:$0x1]
          %v896 = vperm.slane %v892, 0
          %v897 = vperm.slane %v893, 0
          %v900 = vadd.f32 %v861, %v896
          %v901 = vadd.f32 %v863, %v896
          %v902 = vadd.f32 %v888, %v897
          %v903 = vadd.f32 %v890, %v897
          %vm904 = vcmask 130048
          %v905 = vsel %vm904, %v900, -inf
          %906 = vmax.xlane.f32.xlu0 %v905
          %v907 = vpop.xlane.xlu0 %906
          %v908 = vsel %vm904, %v901, -inf
          %909 = vmax.xlane.f32.xlu0 %v908
          %v910 = vpop.xlane.xlu0 %909
          %v911 = vsel %vm904, %v902, -inf
          %912 = vmax.xlane.f32.xlu0 %v911
          %v913 = vpop.xlane.xlu0 %912
          %v914 = vsel %vm904, %v903, -inf
          %915 = vmax.xlane.f32.xlu0 %v914
          %v916 = vpop.xlane.xlu0 %915
          %v917 = vsub.f32 %v900, %v907
          %v918 = vsub.f32 %v901, %v910
          %v919 = vsub.f32 %v902, %v913
          %v920 = vsub.f32 %v903, %v916
          %v921 = vmul.f32 %v917, 1.442695
          %v922 = vpow.pop %v921
          %v923 = vmul.f32 %v918, 1.442695
          %v924 = vpow.pop %v923
          %v925 = vmul.f32 %v919, 1.442695
          %v926 = vpow.pop %v925
          %v927 = vmul.f32 %v920, 1.442695
          %v928 = vpow.pop %v927
          %v929 = vsel %vm904, %v922, 0.0
          %930 = vadd.xlane.f32.xlu0 %v929
          %v931 = vpop.xlane.xlu0 %930
          %v932 = vsel %vm904, %v924, 0.0
          %933 = vadd.xlane.f32.xlu0 %v932
          %v934 = vpop.xlane.xlu0 %933
          %v935 = vsel %vm904, %v926, 0.0
          %936 = vadd.xlane.f32.xlu0 %v935
          %v937 = vpop.xlane.xlu0 %936
          %v938 = vsel %vm904, %v928, 0.0
          %939 = vadd.xlane.f32.xlu0 %v938
          %v940 = vpop.xlane.xlu0 %939
          %v941 = vrcp.pop %v931
          %v942 = vrcp.pop %v934
          %v943 = vrcp.pop %v937
          %v944 = vrcp.pop %v940
          %v945 = vmul.f32 %v922, %v941
          %v946 = vmul.f32 %v924, %v942
          %v947 = vmul.f32 %v926, %v943
          %v948 = vmul.f32 %v928, %v944
          %v949 = vpack.c.bf16 %v945, %v945
          %v950 = vpack.c.bf16 %v946, %v946
          %v951 = vpack.c.bf16 %v947, %v947
          %v952 = vpack.c.bf16 %v948, %v948
          %v955 = vunpack.c.l.b16 %v949
          %v956 = vunpack.c.l.b16 %v950
          %v957 = vpack.c.b16 %v956, %v955
          %958 = vrot.lane.b32.xlu0 %v842, 64
          %v959 = vpop.permute.xlu0 %958
          %v962 = vsel %vm904, %v957, 0
          %964 = vmatpush.bf16.msra.mxu0 0
          %965 = vmatpush.bf16.msra.mxu0 0
          %966 = vmatpush.bf16.msra.mxu0 0
          %967 = vmatpush.bf16.msra.mxu0 0
          %968 = vmatpush.bf16.msra.mxu0 0
          %969 = vmatpush.bf16.msra.mxu0 0
          %970 = vmatpush.bf16.msra.mxu0 0
          %971 = vmatpush.bf16.msra.mxu0 %v959
          %972 = vmatmul.bf16.gmra.mxu0 %v962
          %v973 = vpop.f32.mrf.mxu0
          %v974 = vadd.f32 0.0, %v973
          %v975 = vpop.f32.mrf.mxu0
          %v976 = vadd.f32 0.0, %v975
          %977 = vdwg.mxu0
          %v980 = vunpack.c.l.b16 %v951
          %v981 = vunpack.c.l.b16 %v952
          %v982 = vpack.c.b16 %v981, %v980
          %983 = vrot.lane.b32.xlu0 %v869, 64
          %v984 = vpop.permute.xlu0 %983
          %v987 = vsel %vm904, %v982, 0
          %989 = vmatpush.bf16.msra.mxu0 0
          %990 = vmatpush.bf16.msra.mxu0 0
          %991 = vmatpush.bf16.msra.mxu0 0
          %992 = vmatpush.bf16.msra.mxu0 0
          %993 = vmatpush.bf16.msra.mxu0 0
          %994 = vmatpush.bf16.msra.mxu0 0
          %995 = vmatpush.bf16.msra.mxu0 0
          %996 = vmatpush.bf16.msra.mxu0 %v984
          %997 = vmatmul.bf16.gmra.mxu0 %v987
          %v998 = vpop.f32.mrf.mxu0
          %v999 = vadd.f32 0.0, %v998
          %v1000 = vpop.f32.mrf.mxu0
          %v1001 = vadd.f32 0.0, %v1000
          %1002 = vdwg.mxu0
          %v1003 = vadd.f32 %v781, %v974
          %v1004 = vadd.f32 %v782, %v976
          %v1005 = vadd.f32 %v783, %v999
          %v1006 = vadd.f32 %v784, %v1001
          %vm1011 = vcmask 1046528
          %v1012 = vrot.slane %v1003, 1
          %v1013 = vrot.slane %v1004, 1
          %v1014 = vsel %vm1011, %v1012, %v1013
          %v1015 = vrot.slane %v1005, 1
          %v1016 = vrot.slane %v1006, 1
          %v1017 = vsel %vm1011, %v1015, %v1016
          %v1020 = vpack.c.bf16 %v1014, %v1014
          %v1021 = vpack.c.bf16 %v1017, %v1017
          %vm1022 = vcmask 257024
          %1023 = vst.msk [vmem:[#allocation2] sm:$0xf] %vm1022, %v1020
          %1024 = vst.msk [vmem:[#allocation2 + $0x4] sm:$0xf] %vm1022, %v1021
        $region129: #{tpu_custom_call.1} parent=100 // pred_fallthru
          _
        %v1025 = vld [vmem:[#allocation2] sm:$0xf]
        %v1026 = vld [vmem:[#allocation2 + $0x4] sm:$0xf]
        %v1027 = vld [vmem:[%s537] sm:$0xf]
        %v1028 = vld [vmem:[%s537 + $0x4] sm:$0xf]
        %v1029 = vld [vmem:[%s537 + $0x8] sm:$0xf]
        %v1030 = vld [vmem:[%s537 + $0xc] sm:$0xf]
        %v1033 = vunpack.c.l.b16 %v1025
        %v1034 = vunpack.c.l.b16 %v1026
        %v1035 = vpack.c.b16 %v1034, %v1033
        %v1040 = vunpack.c.l.b16 %v1027
        %v1041 = vunpack.c.l.b16 %v1028
        %v1042 = vunpack.c.l.b16 %v1029
        %v1043 = vunpack.c.l.b16 %v1030
        %v1044 = vpack.c.b16 %v1041, %v1040
        %v1045 = vpack.c.b16 %v1043, %v1042
        %vm1048 = vcmask 261120
        %v1050 = vsel %vm1048, %v1035, 0
        %1052 = vmatpush.bf16.msra.mxu0 0
        %1053 = vmatpush.bf16.msra.mxu0 0
        %1054 = vmatpush.bf16.msra.mxu0 0
        %1055 = vmatpush.bf16.msra.mxu0 0
        %1056 = vmatpush.bf16.msra.mxu0 0
        %1057 = vmatpush.bf16.msra.mxu0 0
        %1058 = vmatpush.bf16.msra.mxu0 %v1045
        %1059 = vmatpush.bf16.msra.mxu0 %v1044
        %1060 = vmatmul.bf16.gmra.mxu0 %v1050
        %v1061 = vpop.f32.mrf.mxu0
        %v1062 = vadd.f32 0.0, %v1061
        %v1063 = vpop.f32.mrf.mxu0
        %v1064 = vadd.f32 0.0, %v1063
        %1065 = vdwg.mxu0
        %1066 = vst [vmem:[%s586] sm:$0xff] %v1062
        %1067 = vst [vmem:[%s586 + $0x8] sm:$0xff] %v1064
        %s1068 = sand.u32 %s303, 1
        %s1069 = scalar_lea.sflag [#allocation5], %s1068
        %s1070 = sand.u32 %s303, 1
        %s1071 = smul.addr %s1070, 16
        %s1072 = scalar_lea.vmem [#allocation13], %s1071
        // Predicated region
        $region130: #{tpu_custom_call.1} parent=100 // pred_check
          %p1073 = pneg %p313
        $region131: #{tpu_custom_call.1} parent=100 // pred_check_branch
          %1075 = sbr.rel (%p1073) target = $region133
        $region132: #{tpu_custom_call.1} parent=100 // pred_region
          %s1076 = smul.u32 2, %s34
          %1078 = vsyncadd %s1069, 0
          %s1079 = smul.addr %s1076, 2
          %s1080 = sadd.s32 %s35, %s1079
          %s1081 = smul.addr %s1080, 8
          %s1082 = scalar_lea.hbm %s11, %s1081
          %s1083 = sshll.u32 %s1072, 4
          %s1084 = int_to_ptr.vmem [resolvable:$true] %s1083
          %s1085 = sshll.u32 %s1082, 4
          %s1086 = int_to_ptr.hbm [resolvable:$true] %s1085
          %1091 = dma.vmem_to_hbm [thread:$0]  %s1084, 256, %s1086, %s1069, 128, 256, 8
        $region133: #{tpu_custom_call.1} parent=100 // pred_fallthru
          _
      $region101: #{tpu_custom_call.1} parent=5 // pred_fallthru
        _
      %p1092 = scmp.le.s32.totalorder 2, %s25
      // Predicated region
      $region134: #{tpu_custom_call.1} parent=5 // pred_check
        %p1093 = pneg %p1092
      $region135: #{tpu_custom_call.1} parent=5 // pred_check_branch
        %1095 = sbr.rel (%p1093) target = $region137
      $region136: #{tpu_custom_call.1} parent=5 // pred_region
        %s1096 = ssub.s32 %s25, 2
        // Predicated region
        $region138: #{tpu_custom_call.1} parent=136 // pred_check
          %p1097 = pneg %p319
        $region139: #{tpu_custom_call.1} parent=136 // pred_check_branch
          %1099 = sbr.rel (%p1097) target = $region141
        $region140: #{tpu_custom_call.1} parent=136 // pred_region
          %s1100 = sand.u32 %s304, 1
          %s1101 = scalar_lea.sflag [#allocation5], %s1100
          %s1102 = sand.u32 %s304, 1
          %s1103 = smul.addr %s1102, 16
          %s1104 = scalar_lea.vmem [#allocation13], %s1103
          %1106 = dma.done %s1101, 256
        $region141: #{tpu_custom_call.1} parent=136 // pred_fallthru
          _
      $region137: #{tpu_custom_call.1} parent=5 // pred_fallthru
        _
    $region6: #{tpu_custom_call.1} parent=1 // loop_footer
      %s29 = sadd.s32 1, %s25
    $region7: #{tpu_custom_call.1} parent=1 // loop_footer_branch
      %24 = sbr.rel target = $region3
    $region8: #{tpu_custom_call.1} parent=1 // loop_exit
      _
    %1107 = vsyncpa [#allocation4], 1
    %s1108 = scalar_lea.sflag [#allocation4], 1
    %1109 = vsyncpa %s1108, 1
    %1110 = vsyncpa [#allocation7], 1
    %1111 = vsyncpa [#allocation10], 1
    %1112 = vsyncpa [#allocation5], 1
    %s1113 = scalar_lea.sflag [#allocation5], 1
    %1114 = vsyncpa %s1113, 1

</llo_original>
